<compile_context>
chip_gen: v7x
topology: tpu7x:2x2x1
jax: 0.10.0
libtpu: 0.0.40
codegen_flags: <defaults>
</compile_context>

<pallas_src>
import functools

import jax
import jax.numpy as jnp
from jax.experimental import pallas as pl
from jax.experimental.pallas import tpu as pltpu

F_PAD = 128  # lane-dense feature width (in_feats / hidden are tiny; pad to one vreg lane span)


def _round_up(x, m):
    return ((x + m - 1) // m) * m


def _pad2(a, rows, cols):
    a = a.astype(jnp.float32)
    return jnp.pad(a, ((0, rows - a.shape[0]), (0, cols - a.shape[1])))


def _sage_kernel(tm, tk, fuse_pred,
                 a_ref, h_ref, inv_ref, wn_ref, ws_ref, b_ref, *rest):
    """One SAGEConv('mean') layer (+ optional fused prediction Linear) over a (row, k) grid.

    a_ref   : (tm, tk)      bf16 binary adjacency tile, streamed from HBM
    h_ref   : (n_pad, 128)  bf16 activations, VMEM-resident (constant-index full block)
    inv_ref : (n_pad, 1)    f32 1/in_deg (0 where deg == 0), VMEM-resident
    wn/ws/b : padded f32 SAGE weights; rest = ([wp, bp,] o_ref, acc_ref)
    """
    if fuse_pred:
        wp_ref, bp_ref, o_ref, acc_ref = rest
    else:
        wp_ref = bp_ref = None
        o_ref, acc_ref = rest

    i = pl.program_id(0)
    k = pl.program_id(1)

    @pl.when(k == 0)
    def _():
        acc_ref[...] = jnp.zeros_like(acc_ref)

    # Neighbor-sum partial for this k slab: bf16 x bf16 MXU matmul with f32 accumulation.
    k_off = pl.multiple_of(k * tk, tk)
    acc_ref[...] += jnp.dot(a_ref[...], h_ref[pl.ds(k_off, tk), :],
                            preferred_element_type=jnp.float32)

    @pl.when(k == pl.num_programs(1) - 1)
    def _():
        i_off = pl.multiple_of(i * tm, tm)
        h_i = h_ref[pl.ds(i_off, tm), :].astype(jnp.float32)
        inv_deg = inv_ref[pl.ds(i_off, tm), :]          # (tm, 1) f32
        neigh = acc_ref[...] * inv_deg                  # mean over in-neighbors; deg==0 -> 0
        y = (jnp.dot(neigh, wn_ref[...], preferred_element_type=jnp.float32)
             + jnp.dot(h_i, ws_ref[...], preferred_element_type=jnp.float32)
             + b_ref[...])
        y = jnp.maximum(y, 0.0)                         # F.relu
        # TODO(synk): training-mode Dropout(0.35) not implemented; inference identity only.
        if fuse_pred:
            # prediction Linear folded in; lane-dense [tm, 128] slab, result in column 0.
            y = jnp.dot(y, wp_ref[...], preferred_element_type=jnp.float32) + bp_ref[...]
        o_ref[...] = y.astype(o_ref.dtype)


def _run_layer(a_bin, h, inv_deg, weights, *, tm, tk, out_dtype, fuse_pred):
    n_pad = a_bin.shape[0]
    gm, gk = n_pad // tm, n_pad // tk

    def const_spec(arr):
        # Full-array block with a constant index map -> fetched once, VMEM-resident.
        return pl.BlockSpec(arr.shape, lambda i, k: (0, 0))

    in_specs = [
        # streamed bf16 binary adjacency tiles (the only large HBM stream)
        pl.BlockSpec((tm, tk), lambda i, k: (i, k)),
        const_spec(h),
        const_spec(inv_deg),
    ] + [const_spec(w) for w in weights]

    # VMEM budget: double-buffered A tiles + resident h/inv_deg/weights (x2 headroom) +
    # f32 accumulator + double-buffered output; capped at 48 MiB (v7x has 64 MiB per TC).
    out_isz = 2 if out_dtype == jnp.bfloat16 else 4
    resident = (h.size * 2                      # bf16 activations
                + inv_deg.size * 4 * F_PAD      # (n_pad, 1) f32 occupies padded lanes
                + sum(w.size * 4 for w in weights))
    need = 2 * tm * tk * 2 + 2 * resident + tm * F_PAD * 4 + 2 * tm * F_PAD * out_isz
    vmem_limit = int(min(max(need + (4 << 20), 16 << 20), 48 << 20))

    return pl.pallas_call(
        functools.partial(_sage_kernel, tm, tk, fuse_pred),
        out_shape=jax.ShapeDtypeStruct((n_pad, F_PAD), out_dtype),
        grid=(gm, gk),
        in_specs=in_specs,
        out_specs=pl.BlockSpec((tm, F_PAD), lambda i, k: (i, 0)),
        scratch_shapes=[pltpu.VMEM((tm, F_PAD), jnp.float32)],
        compiler_params=pltpu.CompilerParams(
            dimension_semantics=("parallel", "arbitrary"),
            vmem_limit_bytes=vmem_limit,
        ),
    )(a_bin, h, inv_deg, *weights)


def graphsage_forward(adj, x, params, *, tile_target=1024):
    """adj: [N, N] binary adjacency (adj[i, j] = 1 iff node j is an in-neighbor of node i);
    x: [N, in_feats] node features; params: flat tuple of SAGE/Linear weights."""
    (wn0, ws0, b0, wn1, ws1, b1, wn2, ws2, b2, wp, bp) = params
    N = x.shape[0]

    # Square A tiles; n_pad is padded to a multiple of the tile, so both the row tile and the
    # reduction tile stay large (they never collapse to 128 unless the graph is that small).
    tile = min(tile_target, _round_up(N, 128))
    n_pad = _round_up(N, tile)

    # Binary adjacency in bf16 ({0,1} exact) is the only large HBM stream.
    # TODO(synk): swap to int8 (v5e/v6e) / fp8 e4m3 (v7x) for another 2x on this stream.
    a_bin = _pad2(adj, n_pad, n_pad).astype(jnp.bfloat16)

    deg = adj.astype(jnp.float32).sum(axis=1, keepdims=True)
    inv_deg = jnp.where(deg > 0, 1.0 / jnp.maximum(deg, 1.0), 0.0)
    inv_deg = _pad2(inv_deg, n_pad, 1)

    # Zero padding keeps the math exact for real rows: padded A rows/cols are zero (no leakage
    # into real rows), padded feature columns stay zero through every layer (zero weight
    # rows/cols, zero bias lanes); padded rows carry relu(bias) garbage and are sliced off.
    h = _pad2(x, n_pad, F_PAD).astype(jnp.bfloat16)

    layer_params = [
        (_pad2(wn0, F_PAD, F_PAD), _pad2(ws0, F_PAD, F_PAD), _pad2(b0, 1, F_PAD)),
        (_pad2(wn1, F_PAD, F_PAD), _pad2(ws1, F_PAD, F_PAD), _pad2(b1, 1, F_PAD)),
        (_pad2(wn2, F_PAD, F_PAD), _pad2(ws2, F_PAD, F_PAD), _pad2(b2, 1, F_PAD)),
    ]
    wpp = _pad2(wp, F_PAD, F_PAD)
    bpp = _pad2(bp, 1, F_PAD)

    # TODO(synk): when bf16 A fits in VMEM, fuse all three layers into one pallas_call.
    for idx, (wn, ws, b) in enumerate(layer_params):
        last = idx == len(layer_params) - 1
        weights = (wn, ws, b) + ((wpp, bpp) if last else ())
        h = _run_layer(a_bin, h, inv_deg, weights, tm=tile, tk=tile,
                       out_dtype=jnp.float32 if last else jnp.bfloat16,
                       fuse_pred=last)
    return h[:N, :1]


def reference_forward(adj, x, params):
    """Pure-JAX reference.  Activations are quantized to bf16 at the same points the kernel
    stores them (input + intermediate layer outputs), isolating kernel correctness."""
    (wn0, ws0, b0, wn1, ws1, b1, wn2, ws2, b2, wp, bp) = params
    deg = adj.astype(jnp.float32).sum(axis=1, keepdims=True)
    a_mean = jnp.where(deg > 0, adj / jnp.maximum(deg, 1.0), 0.0)
    q = lambda v: v.astype(jnp.bfloat16).astype(jnp.float32)
    with jax.default_matmul_precision("highest"):
        h = q(x)
        layers = ((wn0, ws0, b0), (wn1, ws1, b1), (wn2, ws2, b2))
        for li, (wn, ws, b) in enumerate(layers):
            h = jnp.maximum((a_mean @ h) @ wn + h @ ws + b, 0.0)
            if li < len(layers) - 1:
                h = q(h)  # the kernel writes intermediate layers in bf16
        return h @ wp + bp


if __name__ == "__main__":
    N = 16           # nodes
    in_feats = 8     # train_features.shape[1]
    hidden = in_feats // 2
    num_layers = 3

    key = jax.random.PRNGKey(0)
    keys = jax.random.split(key, 16)

    # --- graph: random directed edges, no self loops, binary adjacency ---
    adj = (jax.random.uniform(keys[0], (N, N)) < 0.3).astype(jnp.float32)
    adj = adj * (1.0 - jnp.eye(N, dtype=jnp.float32))

    # --- node features ---
    x = jax.random.normal(keys[1], (N, in_feats), dtype=jnp.float32)

    # --- deterministic parameters (SAGEConv has W_neigh, W_self, bias; Linear has W, b) ---
    def w(k, shape, fan_in):
        return jax.random.normal(k, shape, dtype=jnp.float32) / jnp.sqrt(float(fan_in))

    wn0 = w(keys[2], (in_feats, hidden), in_feats)
    ws0 = w(keys[3], (in_feats, hidden), in_feats)
    b0 = jnp.zeros((1, hidden), dtype=jnp.float32)
    wn1 = w(keys[4], (hidden, hidden), hidden)
    ws1 = w(keys[5], (hidden, hidden), hidden)
    b1 = 0.01 * jnp.ones((1, hidden), dtype=jnp.float32)
    wn2 = w(keys[6], (hidden, hidden), hidden)
    ws2 = w(keys[7], (hidden, hidden), hidden)
    b2 = -0.01 * jnp.ones((1, hidden), dtype=jnp.float32)
    wp = w(keys[8], (hidden, 1), hidden)
    bp = jnp.full((1, 1), 0.05, dtype=jnp.float32)

    params = (wn0, ws0, b0, wn1, ws1, b1, wn2, ws2, b2, wp, bp)

    fwd = jax.jit(graphsage_forward)
    out = jax.block_until_ready(fwd(adj, x, params))

    ref = reference_forward(adj, x, params)

    assert out.shape == (N, 1)
    # f32 accumulation everywhere; only activation storage is bf16 (matched in the reference).
    assert jnp.allclose(out, ref, atol=5e-3, rtol=5e-3), "mismatch vs reference"

    print("KERNEL_OK")
</pallas_src>

<mosaic_0001>
module attributes {stable_mosaic.version = 11 : i64} {
  func.func @_sage_kernel(%arg0: i32, %arg1: i32, %arg2: memref<128x128xbf16, #tpu.memory_space<vmem>>, %arg3: memref<128x128xbf16, #tpu.memory_space<vmem>>, %arg4: memref<128x1xf32, #tpu.memory_space<vmem>>, %arg5: memref<128x128xf32, #tpu.memory_space<vmem>>, %arg6: memref<128x128xf32, #tpu.memory_space<vmem>>, %arg7: memref<1x128xf32, #tpu.memory_space<vmem>>, %arg8: memref<128x128xbf16, #tpu.memory_space<vmem>>, %arg9: memref<128x128xf32, #tpu.memory_space<vmem>>) attributes {dimension_semantics = [#tpu.dimension_semantics<parallel>, #tpu.dimension_semantics<arbitrary>], iteration_bounds = array<i64: 1, 1>, scalar_prefetch = 0 : i64, scratch_operands = 1 : i64, tpu.core_type = #tpu.core_type<tc>, window_params = [{transform_indices = @transform_0, window_bounds = array<i64: 128, 128>}, {pipeline_mode = #tpu.pipeline_mode<synchronous>, transform_indices = @transform_1, window_bounds = array<i64: 128, 128>}, {pipeline_mode = #tpu.pipeline_mode<synchronous>, transform_indices = @transform_2, window_bounds = array<i64: 128, 1>}, {pipeline_mode = #tpu.pipeline_mode<synchronous>, transform_indices = @transform_3, window_bounds = array<i64: 128, 128>}, {pipeline_mode = #tpu.pipeline_mode<synchronous>, transform_indices = @transform_4, window_bounds = array<i64: 128, 128>}, {pipeline_mode = #tpu.pipeline_mode<synchronous>, transform_indices = @transform_5, window_bounds = array<i64: 1, 128>}, {transform_indices = @transform_6, window_bounds = array<i64: 128, 128>}]} {
    %c0_i32 = arith.constant 0 : i32
    %0 = arith.cmpi eq, %arg1, %c0_i32 : i32
    %1 = arith.extui %0 : i1 to i32
    %c0_i32_0 = arith.constant 0 : i32
    %2 = arith.cmpi ne, %1, %c0_i32_0 : i32
    scf.if %2 {
      %cst_9 = arith.constant 0.000000e+00 : f32
      %15 = vector.broadcast %cst_9 : f32 to vector<128x128xf32>
      %c0_10 = arith.constant 0 : index
      %c0_11 = arith.constant 0 : index
      %16 = vector.load %arg9[%c0_10, %c0_11] : memref<128x128xf32, #tpu.memory_space<vmem>>, vector<128x128xf32>
      tpu.vector_store %arg9[%c0_10, %c0_11], %15 {strides = array<i32>} : memref<128x128xf32, #tpu.memory_space<vmem>>, vector<128x128xf32>,
    } else {
    }
    %c128_i32 = arith.constant 128 : i32
    %3 = arith.muli %arg1, %c128_i32 : i32
    %4 = tpu.assume_multiple %3, 128 : i32
    %c0 = arith.constant 0 : index
    %c0_1 = arith.constant 0 : index
    %5 = vector.load %arg9[%c0, %c0_1] : memref<128x128xf32, #tpu.memory_space<vmem>>, vector<128x128xf32>
    %c0_2 = arith.constant 0 : index
    %c0_3 = arith.constant 0 : index
    %6 = vector.load %arg2[%c0_2, %c0_3] : memref<128x128xbf16, #tpu.memory_space<vmem>>, vector<128x128xbf16>
    %7 = arith.index_cast %4 : i32 to index
    %c0_4 = arith.constant 0 : index
    %8 = vector.load %arg3[%7, %c0_4] : memref<128x128xbf16, #tpu.memory_space<vmem>>, vector<128x128xbf16>
    %cst = arith.constant dense<0.000000e+00> : vector<128x128xf32>
    %9 = tpu.matmul %6, %8, %cst {dimension_numbers = #tpu.dot_dimension_numbers<[1], [0], [0], [1], [0, 0, 1, 1], [], []>} : vector<128x128xbf16>, vector<128x128xbf16>, vector<128x128xf32> -> vector<128x128xf32>
    %10 = arith.addf %5, %9 : vector<128x128xf32>
    %c0_5 = arith.constant 0 : index
    %c0_6 = arith.constant 0 : index
    %11 = vector.load %arg9[%c0_5, %c0_6] : memref<128x128xf32, #tpu.memory_space<vmem>>, vector<128x128xf32>
    tpu.vector_store %arg9[%c0_5, %c0_6], %10 {strides = array<i32>} : memref<128x128xf32, #tpu.memory_space<vmem>>, vector<128x128xf32>,
    %c0_i32_7 = arith.constant 0 : i32
    %12 = arith.cmpi eq, %arg1, %c0_i32_7 : i32
    %13 = arith.extui %12 : i1 to i32
    %c0_i32_8 = arith.constant 0 : i32
    %14 = arith.cmpi ne, %13, %c0_i32_8 : i32
    scf.if %14 {
      %c128_i32_9 = arith.constant 128 : i32
      %15 = arith.muli %arg0, %c128_i32_9 : i32
      %16 = tpu.assume_multiple %15, 128 : i32
      %17 = arith.index_cast %16 : i32 to index
      %c0_10 = arith.constant 0 : index
      %18 = vector.load %arg3[%17, %c0_10] : memref<128x128xbf16, #tpu.memory_space<vmem>>, vector<128x128xbf16>
      %19 = arith.extf %18 : vector<128x128xbf16> to vector<128x128xf32>
      %20 = arith.index_cast %16 : i32 to index
      %c0_11 = arith.constant 0 : index
      %21 = vector.load %arg4[%20, %c0_11] : memref<128x1xf32, #tpu.memory_space<vmem>>, vector<128x1xf32>
      %c0_12 = arith.constant 0 : index
      %c0_13 = arith.constant 0 : index
      %22 = vector.load %arg9[%c0_12, %c0_13] : memref<128x128xf32, #tpu.memory_space<vmem>>, vector<128x128xf32>
      %23 = vector.broadcast %21 : vector<128x1xf32> to vector<128x128xf32>
      %24 = arith.mulf %22, %23 : vector<128x128xf32>
      %c0_14 = arith.constant 0 : index
      %c0_15 = arith.constant 0 : index
      %25 = vector.load %arg5[%c0_14, %c0_15] : memref<128x128xf32, #tpu.memory_space<vmem>>, vector<128x128xf32>
      %cst_16 = arith.constant dense<0.000000e+00> : vector<128x128xf32>
      %26 = tpu.matmul %24, %25, %cst_16 {dimension_numbers = #tpu.dot_dimension_numbers<[1], [0], [0], [1], [0, 0, 1, 1], [], []>} : vector<128x128xf32>, vector<128x128xf32>, vector<128x128xf32> -> vector<128x128xf32>
      %c0_17 = arith.constant 0 : index
      %c0_18 = arith.constant 0 : index
      %27 = vector.load %arg6[%c0_17, %c0_18] : memref<128x128xf32, #tpu.memory_space<vmem>>, vector<128x128xf32>
      %cst_19 = arith.constant dense<0.000000e+00> : vector<128x128xf32>
      %28 = tpu.matmul %19, %27, %cst_19 {dimension_numbers = #tpu.dot_dimension_numbers<[1], [0], [0], [1], [0, 0, 1, 1], [], []>} : vector<128x128xf32>, vector<128x128xf32>, vector<128x128xf32> -> vector<128x128xf32>
      %29 = arith.addf %26, %28 : vector<128x128xf32>
      %c0_20 = arith.constant 0 : index
      %c0_21 = arith.constant 0 : index
      %30 = vector.load %arg7[%c0_20, %c0_21] : memref<1x128xf32, #tpu.memory_space<vmem>>, vector<1x128xf32>
      %31 = vector.broadcast %30 : vector<1x128xf32> to vector<128x128xf32>
      %32 = arith.addf %29, %31 : vector<128x128xf32>
      %cst_22 = arith.constant 0.000000e+00 : f32
      %33 = vector.broadcast %cst_22 : f32 to vector<128x128xf32>
      %34 = arith.maximumf %32, %33 : vector<128x128xf32>
      %35 = arith.truncf %34 : vector<128x128xf32> to vector<128x128xbf16>
      %c0_23 = arith.constant 0 : index
      %c0_24 = arith.constant 0 : index
      %36 = vector.load %arg8[%c0_23, %c0_24] : memref<128x128xbf16, #tpu.memory_space<vmem>>, vector<128x128xbf16>
      tpu.vector_store %arg8[%c0_23, %c0_24], %35 {strides = array<i32>} : memref<128x128xbf16, #tpu.memory_space<vmem>>, vector<128x128xbf16>,
    } else {
    }
    return
  }
  func.func @transform_0(%arg0: i32, %arg1: i32) -> (i32, i32) {
    %c0_i32 = arith.constant 0 : i32
    return %arg0, %arg1 : i32, i32
  }
  func.func @transform_1(%arg0: i32, %arg1: i32) -> (i32, i32) {
    %c0_i32 = arith.constant 0 : i32
    %c0_i32_0 = arith.constant 0 : i32
    %c0_i32_1 = arith.constant 0 : i32
    return %c0_i32, %c0_i32_0 : i32, i32
  }
  func.func @transform_2(%arg0: i32, %arg1: i32) -> (i32, i32) {
    %c0_i32 = arith.constant 0 : i32
    %c0_i32_0 = arith.constant 0 : i32
    %c0_i32_1 = arith.constant 0 : i32
    return %c0_i32, %c0_i32_0 : i32, i32
  }
  func.func @transform_3(%arg0: i32, %arg1: i32) -> (i32, i32) {
    %c0_i32 = arith.constant 0 : i32
    %c0_i32_0 = arith.constant 0 : i32
    %c0_i32_1 = arith.constant 0 : i32
    return %c0_i32, %c0_i32_0 : i32, i32
  }
  func.func @transform_4(%arg0: i32, %arg1: i32) -> (i32, i32) {
    %c0_i32 = arith.constant 0 : i32
    %c0_i32_0 = arith.constant 0 : i32
    %c0_i32_1 = arith.constant 0 : i32
    return %c0_i32, %c0_i32_0 : i32, i32
  }
  func.func @transform_5(%arg0: i32, %arg1: i32) -> (i32, i32) {
    %c0_i32 = arith.constant 0 : i32
    %c0_i32_0 = arith.constant 0 : i32
    %c0_i32_1 = arith.constant 0 : i32
    return %c0_i32, %c0_i32_0 : i32, i32
  }
  func.func @transform_6(%arg0: i32, %arg1: i32) -> (i32, i32) {
    %c0_i32 = arith.constant 0 : i32
    %c0_i32_0 = arith.constant 0 : i32
    return %arg0, %c0_i32 : i32, i32
  }
}

module attributes {stable_mosaic.version = 11 : i64} {
  func.func @_sage_kernel(%arg0: i32, %arg1: i32, %arg2: memref<128x128xbf16, #tpu.memory_space<vmem>>, %arg3: memref<128x128xbf16, #tpu.memory_space<vmem>>, %arg4: memref<128x1xf32, #tpu.memory_space<vmem>>, %arg5: memref<128x128xf32, #tpu.memory_space<vmem>>, %arg6: memref<128x128xf32, #tpu.memory_space<vmem>>, %arg7: memref<1x128xf32, #tpu.memory_space<vmem>>, %arg8: memref<128x128xf32, #tpu.memory_space<vmem>>, %arg9: memref<1x128xf32, #tpu.memory_space<vmem>>, %arg10: memref<128x128xf32, #tpu.memory_space<vmem>>, %arg11: memref<128x128xf32, #tpu.memory_space<vmem>>) attributes {dimension_semantics = [#tpu.dimension_semantics<parallel>, #tpu.dimension_semantics<arbitrary>], iteration_bounds = array<i64: 1, 1>, scalar_prefetch = 0 : i64, scratch_operands = 1 : i64, tpu.core_type = #tpu.core_type<tc>, window_params = [{transform_indices = @transform_0, window_bounds = array<i64: 128, 128>}, {pipeline_mode = #tpu.pipeline_mode<synchronous>, transform_indices = @transform_1, window_bounds = array<i64: 128, 128>}, {pipeline_mode = #tpu.pipeline_mode<synchronous>, transform_indices = @transform_2, window_bounds = array<i64: 128, 1>}, {pipeline_mode = #tpu.pipeline_mode<synchronous>, transform_indices = @transform_3, window_bounds = array<i64: 128, 128>}, {pipeline_mode = #tpu.pipeline_mode<synchronous>, transform_indices = @transform_4, window_bounds = array<i64: 128, 128>}, {pipeline_mode = #tpu.pipeline_mode<synchronous>, transform_indices = @transform_5, window_bounds = array<i64: 1, 128>}, {pipeline_mode = #tpu.pipeline_mode<synchronous>, transform_indices = @transform_6, window_bounds = array<i64: 128, 128>}, {pipeline_mode = #tpu.pipeline_mode<synchronous>, transform_indices = @transform_7, window_bounds = array<i64: 1, 128>}, {transform_indices = @transform_8, window_bounds = array<i64: 128, 128>}]} {
    %c0_i32 = arith.constant 0 : i32
    %0 = arith.cmpi eq, %arg1, %c0_i32 : i32
    %1 = arith.extui %0 : i1 to i32
    %c0_i32_0 = arith.constant 0 : i32
    %2 = arith.cmpi ne, %1, %c0_i32_0 : i32
    scf.if %2 {
      %cst_9 = arith.constant 0.000000e+00 : f32
      %15 = vector.broadcast %cst_9 : f32 to vector<128x128xf32>
      %c0_10 = arith.constant 0 : index
      %c0_11 = arith.constant 0 : index
      %16 = vector.load %arg11[%c0_10, %c0_11] : memref<128x128xf32, #tpu.memory_space<vmem>>, vector<128x128xf32>
      tpu.vector_store %arg11[%c0_10, %c0_11], %15 {strides = array<i32>} : memref<128x128xf32, #tpu.memory_space<vmem>>, vector<128x128xf32>,
    } else {
    }
    %c128_i32 = arith.constant 128 : i32
    %3 = arith.muli %arg1, %c128_i32 : i32
    %4 = tpu.assume_multiple %3, 128 : i32
    %c0 = arith.constant 0 : index
    %c0_1 = arith.constant 0 : index
    %5 = vector.load %arg11[%c0, %c0_1] : memref<128x128xf32, #tpu.memory_space<vmem>>, vector<128x128xf32>
    %c0_2 = arith.constant 0 : index
    %c0_3 = arith.constant 0 : index
    %6 = vector.load %arg2[%c0_2, %c0_3] : memref<128x128xbf16, #tpu.memory_space<vmem>>, vector<128x128xbf16>
    %7 = arith.index_cast %4 : i32 to index
    %c0_4 = arith.constant 0 : index
    %8 = vector.load %arg3[%7, %c0_4] : memref<128x128xbf16, #tpu.memory_space<vmem>>, vector<128x128xbf16>
    %cst = arith.constant dense<0.000000e+00> : vector<128x128xf32>
    %9 = tpu.matmul %6, %8, %cst {dimension_numbers = #tpu.dot_dimension_numbers<[1], [0], [0], [1], [0, 0, 1, 1], [], []>} : vector<128x128xbf16>, vector<128x128xbf16>, vector<128x128xf32> -> vector<128x128xf32>
    %10 = arith.addf %5, %9 : vector<128x128xf32>
    %c0_5 = arith.constant 0 : index
    %c0_6 = arith.constant 0 : index
    %11 = vector.load %arg11[%c0_5, %c0_6] : memref<128x128xf32, #tpu.memory_space<vmem>>, vector<128x128xf32>
    tpu.vector_store %arg11[%c0_5, %c0_6], %10 {strides = array<i32>} : memref<128x128xf32, #tpu.memory_space<vmem>>, vector<128x128xf32>,
    %c0_i32_7 = arith.constant 0 : i32
    %12 = arith.cmpi eq, %arg1, %c0_i32_7 : i32
    %13 = arith.extui %12 : i1 to i32
    %c0_i32_8 = arith.constant 0 : i32
    %14 = arith.cmpi ne, %13, %c0_i32_8 : i32
    scf.if %14 {
      %c128_i32_9 = arith.constant 128 : i32
      %15 = arith.muli %arg0, %c128_i32_9 : i32
      %16 = tpu.assume_multiple %15, 128 : i32
      %17 = arith.index_cast %16 : i32 to index
      %c0_10 = arith.constant 0 : index
      %18 = vector.load %arg3[%17, %c0_10] : memref<128x128xbf16, #tpu.memory_space<vmem>>, vector<128x128xbf16>
      %19 = arith.extf %18 : vector<128x128xbf16> to vector<128x128xf32>
      %20 = arith.index_cast %16 : i32 to index
      %c0_11 = arith.constant 0 : index
      %21 = vector.load %arg4[%20, %c0_11] : memref<128x1xf32, #tpu.memory_space<vmem>>, vector<128x1xf32>
      %c0_12 = arith.constant 0 : index
      %c0_13 = arith.constant 0 : index
      %22 = vector.load %arg11[%c0_12, %c0_13] : memref<128x128xf32, #tpu.memory_space<vmem>>, vector<128x128xf32>
      %23 = vector.broadcast %21 : vector<128x1xf32> to vector<128x128xf32>
      %24 = arith.mulf %22, %23 : vector<128x128xf32>
      %c0_14 = arith.constant 0 : index
      %c0_15 = arith.constant 0 : index
      %25 = vector.load %arg5[%c0_14, %c0_15] : memref<128x128xf32, #tpu.memory_space<vmem>>, vector<128x128xf32>
      %cst_16 = arith.constant dense<0.000000e+00> : vector<128x128xf32>
      %26 = tpu.matmul %24, %25, %cst_16 {dimension_numbers = #tpu.dot_dimension_numbers<[1], [0], [0], [1], [0, 0, 1, 1], [], []>} : vector<128x128xf32>, vector<128x128xf32>, vector<128x128xf32> -> vector<128x128xf32>
      %c0_17 = arith.constant 0 : index
      %c0_18 = arith.constant 0 : index
      %27 = vector.load %arg6[%c0_17, %c0_18] : memref<128x128xf32, #tpu.memory_space<vmem>>, vector<128x128xf32>
      %cst_19 = arith.constant dense<0.000000e+00> : vector<128x128xf32>
      %28 = tpu.matmul %19, %27, %cst_19 {dimension_numbers = #tpu.dot_dimension_numbers<[1], [0], [0], [1], [0, 0, 1, 1], [], []>} : vector<128x128xf32>, vector<128x128xf32>, vector<128x128xf32> -> vector<128x128xf32>
      %29 = arith.addf %26, %28 : vector<128x128xf32>
      %c0_20 = arith.constant 0 : index
      %c0_21 = arith.constant 0 : index
      %30 = vector.load %arg7[%c0_20, %c0_21] : memref<1x128xf32, #tpu.memory_space<vmem>>, vector<1x128xf32>
      %31 = vector.broadcast %30 : vector<1x128xf32> to vector<128x128xf32>
      %32 = arith.addf %29, %31 : vector<128x128xf32>
      %cst_22 = arith.constant 0.000000e+00 : f32
      %33 = vector.broadcast %cst_22 : f32 to vector<128x128xf32>
      %34 = arith.maximumf %32, %33 : vector<128x128xf32>
      %c0_23 = arith.constant 0 : index
      %c0_24 = arith.constant 0 : index
      %35 = vector.load %arg8[%c0_23, %c0_24] : memref<128x128xf32, #tpu.memory_space<vmem>>, vector<128x128xf32>
      %cst_25 = arith.constant dense<0.000000e+00> : vector<128x128xf32>
      %36 = tpu.matmul %34, %35, %cst_25 {dimension_numbers = #tpu.dot_dimension_numbers<[1], [0], [0], [1], [0, 0, 1, 1], [], []>} : vector<128x128xf32>, vector<128x128xf32>, vector<128x128xf32> -> vector<128x128xf32>
      %c0_26 = arith.constant 0 : index
      %c0_27 = arith.constant 0 : index
      %37 = vector.load %arg9[%c0_26, %c0_27] : memref<1x128xf32, #tpu.memory_space<vmem>>, vector<1x128xf32>
      %38 = vector.broadcast %37 : vector<1x128xf32> to vector<128x128xf32>
      %39 = arith.addf %36, %38 : vector<128x128xf32>
      %c0_28 = arith.constant 0 : index
      %c0_29 = arith.constant 0 : index
      %40 = vector.load %arg10[%c0_28, %c0_29] : memref<128x128xf32, #tpu.memory_space<vmem>>, vector<128x128xf32>
      tpu.vector_store %arg10[%c0_28, %c0_29], %39 {strides = array<i32>} : memref<128x128xf32, #tpu.memory_space<vmem>>, vector<128x128xf32>,
    } else {
    }
    return
  }
  func.func @transform_0(%arg0: i32, %arg1: i32) -> (i32, i32) {
    %c0_i32 = arith.constant 0 : i32
    return %arg0, %arg1 : i32, i32
  }
  func.func @transform_1(%arg0: i32, %arg1: i32) -> (i32, i32) {
    %c0_i32 = arith.constant 0 : i32
    %c0_i32_0 = arith.constant 0 : i32
    %c0_i32_1 = arith.constant 0 : i32
    return %c0_i32, %c0_i32_0 : i32, i32
  }
  func.func @transform_2(%arg0: i32, %arg1: i32) -> (i32, i32) {
    %c0_i32 = arith.constant 0 : i32
    %c0_i32_0 = arith.constant 0 : i32
    %c0_i32_1 = arith.constant 0 : i32
    return %c0_i32, %c0_i32_0 : i32, i32
  }
  func.func @transform_3(%arg0: i32, %arg1: i32) -> (i32, i32) {
    %c0_i32 = arith.constant 0 : i32
    %c0_i32_0 = arith.constant 0 : i32
    %c0_i32_1 = arith.constant 0 : i32
    return %c0_i32, %c0_i32_0 : i32, i32
  }
  func.func @transform_4(%arg0: i32, %arg1: i32) -> (i32, i32) {
    %c0_i32 = arith.constant 0 : i32
    %c0_i32_0 = arith.constant 0 : i32
    %c0_i32_1 = arith.constant 0 : i32
    return %c0_i32, %c0_i32_0 : i32, i32
  }
  func.func @transform_5(%arg0: i32, %arg1: i32) -> (i32, i32) {
    %c0_i32 = arith.constant 0 : i32
    %c0_i32_0 = arith.constant 0 : i32
    %c0_i32_1 = arith.constant 0 : i32
    return %c0_i32, %c0_i32_0 : i32, i32
  }
  func.func @transform_6(%arg0: i32, %arg1: i32) -> (i32, i32) {
    %c0_i32 = arith.constant 0 : i32
    %c0_i32_0 = arith.constant 0 : i32
    %c0_i32_1 = arith.constant 0 : i32
    return %c0_i32, %c0_i32_0 : i32, i32
  }
  func.func @transform_7(%arg0: i32, %arg1: i32) -> (i32, i32) {
    %c0_i32 = arith.constant 0 : i32
    %c0_i32_0 = arith.constant 0 : i32
    %c0_i32_1 = arith.constant 0 : i32
    return %c0_i32, %c0_i32_0 : i32, i32
  }
  func.func @transform_8(%arg0: i32, %arg1: i32) -> (i32, i32) {
    %c0_i32 = arith.constant 0 : i32
    %c0_i32_0 = arith.constant 0 : i32
    return %arg0, %c0_i32 : i32, i32
  }
}

</mosaic_0001>

<llo_original>
// kernel: graphsage_forward.5
$region0: #{graphsage_forward.5}
  #allocation0 [shape = 'u32[]', space=smem, size = 0x4, offset = 0x4, fixed_abs, tag = 'smem constant byte address 0x4 - core index']
  #allocation1 [shape = 'u32[144,128]{1,0:T(1,128)}', space=vmem, size = 0x12000, scoped, tag = 'internal scratch']
  #allocation2 [shape = 'f32[128,128]{1,0:T(8,128)}', space=vmem, size = 0x10000, scoped, tag = 'scratch operand']
  %s0 = inlined_call_operand.vmem [shape: bf16[128,128], index: 0, kind: input, shape index: {}]
  %s1 = inlined_call_operand.vmem [shape: bf16[128,128], index: 1, kind: input, shape index: {}]
  %s2 = inlined_call_operand.vmem [shape: f32[128,1], index: 2, kind: input, shape index: {}]
  %s3 = inlined_call_operand.vmem [shape: f32[128,128], index: 3, kind: input, shape index: {}]
  %s4 = inlined_call_operand.vmem [shape: f32[128,128], index: 4, kind: input, shape index: {}]
  %s5 = inlined_call_operand.vmem [shape: f32[1,128], index: 5, kind: input, shape index: {}]
  %s6 = inlined_call_operand.vmem [shape: f32[128,128], index: 6, kind: input, shape index: {}]
  %s7 = inlined_call_operand.vmem [shape: f32[1,128], index: 7, kind: input, shape index: {}]
  %s8 = inlined_call_operand.vmem [shape: f32[128,128], index: 8, kind: output, shape index: {}]
  %s9 = sld [smem:[#allocation0]]
  $region50: #{graphsage_forward.5} parent=0
    _
  %s11 = ssub.s32 1, %s9
  %s12 = scalar_select 0, %s11, %s9
  // Predicated region
  $region2: #{graphsage_forward.5} parent=0 // pred_check
    _
  $region3: #{graphsage_forward.5} parent=0 // pred_check_branch
    %14 = sbr.rel (0) target = $region5
  $region4: #{graphsage_forward.5} parent=0 // pred_region
    _
  $region5: #{graphsage_forward.5} parent=0 // pred_fallthru
    _
  // Predicated region
  $region6: #{graphsage_forward.5} parent=0 // pred_check
    _
  $region7: #{graphsage_forward.5} parent=0 // pred_check_branch
    %16 = sbr.rel (0) target = $region9
  $region8: #{graphsage_forward.5} parent=0 // pred_region
    _
  $region9: #{graphsage_forward.5} parent=0 // pred_fallthru
    _
  // Predicated region
  $region10: #{graphsage_forward.5} parent=0 // pred_check
    _
  $region11: #{graphsage_forward.5} parent=0 // pred_check_branch
    %18 = sbr.rel (0) target = $region13
  $region12: #{graphsage_forward.5} parent=0 // pred_region
    _
  $region13: #{graphsage_forward.5} parent=0 // pred_fallthru
    _
  // Predicated region
  $region14: #{graphsage_forward.5} parent=0 // pred_check
    _
  $region15: #{graphsage_forward.5} parent=0 // pred_check_branch
    %20 = sbr.rel (0) target = $region17
  $region16: #{graphsage_forward.5} parent=0 // pred_region
    _
  $region17: #{graphsage_forward.5} parent=0 // pred_fallthru
    _
  // Predicated region
  $region18: #{graphsage_forward.5} parent=0 // pred_check
    _
  $region19: #{graphsage_forward.5} parent=0 // pred_check_branch
    %22 = sbr.rel (0) target = $region21
  $region20: #{graphsage_forward.5} parent=0 // pred_region
    _
  $region21: #{graphsage_forward.5} parent=0 // pred_fallthru
    _
  // Predicated region
  $region22: #{graphsage_forward.5} parent=0 // pred_check
    _
  $region23: #{graphsage_forward.5} parent=0 // pred_check_branch
    %24 = sbr.rel (0) target = $region25
  $region24: #{graphsage_forward.5} parent=0 // pred_region
    _
  $region25: #{graphsage_forward.5} parent=0 // pred_fallthru
    _
  // Predicated region
  $region26: #{graphsage_forward.5} parent=0 // pred_check
    _
  $region27: #{graphsage_forward.5} parent=0 // pred_check_branch
    %26 = sbr.rel (0) target = $region29
  $region28: #{graphsage_forward.5} parent=0 // pred_region
    _
  $region29: #{graphsage_forward.5} parent=0 // pred_fallthru
    _
  // Predicated region
  $region30: #{graphsage_forward.5} parent=0 // pred_check
    _
  $region31: #{graphsage_forward.5} parent=0 // pred_check_branch
    %28 = sbr.rel (0) target = $region33
  $region32: #{graphsage_forward.5} parent=0 // pred_region
    _
  $region33: #{graphsage_forward.5} parent=0 // pred_fallthru
    _
  %p30 = scmp.eq.s32.totalorder 0, 0
  // Predicated region
  $region34: #{graphsage_forward.5} parent=0 // pred_check
    %p31 = pneg %p30
  $region35: #{graphsage_forward.5} parent=0 // pred_check_branch
    %33 = sbr.rel (%p31) target = $region37
  $region36: #{graphsage_forward.5} parent=0 // pred_region
    %34 = vst [vmem:[#allocation2] sm:$0xff] 0.0
    %35 = vst [vmem:[#allocation2 + $0x8] sm:$0xff] 0.0
    %36 = vst [vmem:[#allocation2 + $0x10] sm:$0xff] 0.0
    %37 = vst [vmem:[#allocation2 + $0x18] sm:$0xff] 0.0
    %38 = vst [vmem:[#allocation2 + $0x20] sm:$0xff] 0.0
    %39 = vst [vmem:[#allocation2 + $0x28] sm:$0xff] 0.0
    %40 = vst [vmem:[#allocation2 + $0x30] sm:$0xff] 0.0
    %41 = vst [vmem:[#allocation2 + $0x38] sm:$0xff] 0.0
    %42 = vst [vmem:[#allocation2 + $0x40] sm:$0xff] 0.0
    %43 = vst [vmem:[#allocation2 + $0x48] sm:$0xff] 0.0
    %44 = vst [vmem:[#allocation2 + $0x50] sm:$0xff] 0.0
    %45 = vst [vmem:[#allocation2 + $0x58] sm:$0xff] 0.0
    %46 = vst [vmem:[#allocation2 + $0x60] sm:$0xff] 0.0
    %47 = vst [vmem:[#allocation2 + $0x68] sm:$0xff] 0.0
    %48 = vst [vmem:[#allocation2 + $0x70] sm:$0xff] 0.0
    %49 = vst [vmem:[#allocation2 + $0x78] sm:$0xff] 0.0
  $region37: #{graphsage_forward.5} parent=0 // pred_fallthru
    _
  %s50 = smul.u32 0, 128
  %v51 = vld [vmem:[#allocation2] sm:$0xff]
  %v52 = vld [vmem:[#allocation2 + $0x8] sm:$0xff]
  %v53 = vld [vmem:[#allocation2 + $0x10] sm:$0xff]
  %v54 = vld [vmem:[#allocation2 + $0x18] sm:$0xff]
  %v55 = vld [vmem:[#allocation2 + $0x20] sm:$0xff]
  %v56 = vld [vmem:[#allocation2 + $0x28] sm:$0xff]
  %v57 = vld [vmem:[#allocation2 + $0x30] sm:$0xff]
  %v58 = vld [vmem:[#allocation2 + $0x38] sm:$0xff]
  %v59 = vld [vmem:[#allocation2 + $0x40] sm:$0xff]
  %v60 = vld [vmem:[#allocation2 + $0x48] sm:$0xff]
  %v61 = vld [vmem:[#allocation2 + $0x50] sm:$0xff]
  %v62 = vld [vmem:[#allocation2 + $0x58] sm:$0xff]
  %v63 = vld [vmem:[#allocation2 + $0x60] sm:$0xff]
  %v64 = vld [vmem:[#allocation2 + $0x68] sm:$0xff]
  %v65 = vld [vmem:[#allocation2 + $0x70] sm:$0xff]
  %v66 = vld [vmem:[#allocation2 + $0x78] sm:$0xff]
  %v67 = vld [vmem:[%s0] sm:$0xf]
  %v68 = vld [vmem:[%s0 + $0x4] sm:$0xf]
  %v69 = vld [vmem:[%s0 + $0x8] sm:$0xf]
  %v70 = vld [vmem:[%s0 + $0xc] sm:$0xf]
  %v71 = vld [vmem:[%s0 + $0x10] sm:$0xf]
  %v72 = vld [vmem:[%s0 + $0x14] sm:$0xf]
  %v73 = vld [vmem:[%s0 + $0x18] sm:$0xf]
  %v74 = vld [vmem:[%s0 + $0x1c] sm:$0xf]
  %v75 = vld [vmem:[%s0 + $0x20] sm:$0xf]
  %v76 = vld [vmem:[%s0 + $0x24] sm:$0xf]
  %v77 = vld [vmem:[%s0 + $0x28] sm:$0xf]
  %v78 = vld [vmem:[%s0 + $0x2c] sm:$0xf]
  %v79 = vld [vmem:[%s0 + $0x30] sm:$0xf]
  %v80 = vld [vmem:[%s0 + $0x34] sm:$0xf]
  %v81 = vld [vmem:[%s0 + $0x38] sm:$0xf]
  %v82 = vld [vmem:[%s0 + $0x3c] sm:$0xf]
  %s83 = sshra.s32 %s50, 3
  %s84 = sand.u32 %s50, 7
  %s85 = smul.addr %s83, 4
  %s86 = scalar_lea.vmem %s1, %s85
  %v87 = vld [vmem:[%s86] sm:$0xf]
  %v88 = vld [vmem:[%s86 + $0x4] sm:$0xf]
  %v89 = vld [vmem:[%s86 + $0x8] sm:$0xf]
  %v90 = vld [vmem:[%s86 + $0xc] sm:$0xf]
  %v91 = vld [vmem:[%s86 + $0x10] sm:$0xf]
  %v92 = vld [vmem:[%s86 + $0x14] sm:$0xf]
  %v93 = vld [vmem:[%s86 + $0x18] sm:$0xf]
  %v94 = vld [vmem:[%s86 + $0x1c] sm:$0xf]
  %v95 = vld [vmem:[%s86 + $0x20] sm:$0xf]
  %v96 = vld [vmem:[%s86 + $0x24] sm:$0xf]
  %v97 = vld [vmem:[%s86 + $0x28] sm:$0xf]
  %v98 = vld [vmem:[%s86 + $0x2c] sm:$0xf]
  %v99 = vld [vmem:[%s86 + $0x30] sm:$0xf]
  %v100 = vld [vmem:[%s86 + $0x34] sm:$0xf]
  %v101 = vld [vmem:[%s86 + $0x38] sm:$0xf]
  %v102 = vld [vmem:[%s86 + $0x3c] sm:$0xf]
  %v119 = vunpack.c.l.b16 %v67
  %v120 = vunpack.c.l.b16 %v68
  %v121 = vunpack.c.l.b16 %v69
  %v122 = vunpack.c.l.b16 %v70
  %v123 = vunpack.c.l.b16 %v71
  %v124 = vunpack.c.l.b16 %v72
  %v125 = vunpack.c.l.b16 %v73
  %v126 = vunpack.c.l.b16 %v74
  %v127 = vunpack.c.l.b16 %v75
  %v128 = vunpack.c.l.b16 %v76
  %v129 = vunpack.c.l.b16 %v77
  %v130 = vunpack.c.l.b16 %v78
  %v131 = vunpack.c.l.b16 %v79
  %v132 = vunpack.c.l.b16 %v80
  %v133 = vunpack.c.l.b16 %v81
  %v134 = vunpack.c.l.b16 %v82
  %v135 = vpack.c.b16 %v120, %v119
  %v136 = vpack.c.b16 %v122, %v121
  %v137 = vpack.c.b16 %v124, %v123
  %v138 = vpack.c.b16 %v126, %v125
  %v139 = vpack.c.b16 %v128, %v127
  %v140 = vpack.c.b16 %v130, %v129
  %v141 = vpack.c.b16 %v132, %v131
  %v142 = vpack.c.b16 %v134, %v133
  %v167 = vunpack.c.l.b16 %v87
  %v168 = vunpack.c.l.b16 %v88
  %v169 = vunpack.c.l.b16 %v89
  %v170 = vunpack.c.l.b16 %v90
  %v171 = vunpack.c.l.b16 %v91
  %v172 = vunpack.c.l.b16 %v92
  %v173 = vunpack.c.l.b16 %v93
  %v174 = vunpack.c.l.b16 %v94
  %v175 = vunpack.c.l.b16 %v95
  %v176 = vunpack.c.l.b16 %v96
  %v177 = vunpack.c.l.b16 %v97
  %v178 = vunpack.c.l.b16 %v98
  %v179 = vunpack.c.l.b16 %v99
  %v180 = vunpack.c.l.b16 %v100
  %v181 = vunpack.c.l.b16 %v101
  %v182 = vunpack.c.l.b16 %v102
  %v183 = vpack.c.b16 %v168, %v167
  %v184 = vpack.c.b16 %v170, %v169
  %v185 = vpack.c.b16 %v172, %v171
  %v186 = vpack.c.b16 %v174, %v173
  %v187 = vpack.c.b16 %v176, %v175
  %v188 = vpack.c.b16 %v178, %v177
  %v189 = vpack.c.b16 %v180, %v179
  %v190 = vpack.c.b16 %v182, %v181
  %199 = vmatprep.subr.bf16.mxu0 0
  %200 = vmatpush1.bf16.msra.mxu0 %v183
  %201 = vmatprep.subr.bf16.mxu0 0
  %202 = vmatpush1.bf16.msra.mxu0 %v184
  %203 = vmatprep.subr.bf16.mxu0 0
  %204 = vmatpush1.bf16.msra.mxu0 %v185
  %205 = vmatprep.subr.bf16.mxu0 0
  %206 = vmatpush1.bf16.msra.mxu0 %v186
  %207 = vmatprep.subr.bf16.mxu0 0
  %208 = vmatpush1.bf16.msra.mxu0 %v187
  %209 = vmatprep.subr.bf16.mxu0 0
  %210 = vmatpush1.bf16.msra.mxu0 %v188
  %211 = vmatprep.subr.bf16.mxu0 0
  %212 = vmatpush1.bf16.msra.mxu0 %v189
  %213 = vmatprep.subr.bf16.mxu0 0
  %214 = vmatpush1.bf16.msra.mxu0 %v190
  %215 = vmatprep.subr.bf16.mxu0 0
  %216 = vmatpush1.bf16.msra.mxu0 0
  %217 = vmatprep.subr.bf16.mxu0 0
  %218 = vmatpush1.bf16.msra.mxu0 0
  %219 = vmatprep.subr.bf16.mxu0 0
  %220 = vmatpush1.bf16.msra.mxu0 0
  %221 = vmatprep.subr.bf16.mxu0 0
  %222 = vmatpush1.bf16.msra.mxu0 0
  %223 = vmatprep.subr.bf16.mxu0 0
  %224 = vmatpush1.bf16.msra.mxu0 0
  %225 = vmatprep.subr.bf16.mxu0 0
  %226 = vmatpush1.bf16.msra.mxu0 0
  %227 = vmatprep.subr.bf16.mxu0 0
  %228 = vmatpush1.bf16.msra.mxu0 0
  %229 = vmatprep.subr.bf16.mxu0 0
  %230 = vmatpush1.bf16.msra.mxu0 0
  %231 = vmatprep.mubr.bf16.mxu0 0
  %232 = vmatmul.mubr.bf16.gmra.mrb[0].mxu0 %v135
  %v233 = vpop.f32.mrb[0].mxu0
  %v234 = vadd.f32 0.0, %v233
  %v235 = vpop.f32.mrb[0].mxu0
  %v236 = vpop.f32.mrb[0].mxu0
  %v237 = vadd.f32 0.0, %v236
  %v238 = vpop.f32.mrb[0].mxu0
  %239 = vmatprep.mubr.bf16.mxu0 0
  %240 = vmatmul.mubr.bf16.gmra.mrb[0].mxu0 %v136
  %v241 = vpop.f32.mrb[0].mxu0
  %v242 = vadd.f32 0.0, %v241
  %v243 = vpop.f32.mrb[0].mxu0
  %v244 = vpop.f32.mrb[0].mxu0
  %v245 = vadd.f32 0.0, %v244
  %v246 = vpop.f32.mrb[0].mxu0
  %247 = vmatprep.mubr.bf16.mxu0 0
  %248 = vmatmul.mubr.bf16.gmra.mrb[0].mxu0 %v137
  %v249 = vpop.f32.mrb[0].mxu0
  %v250 = vadd.f32 0.0, %v249
  %v251 = vpop.f32.mrb[0].mxu0
  %v252 = vpop.f32.mrb[0].mxu0
  %v253 = vadd.f32 0.0, %v252
  %v254 = vpop.f32.mrb[0].mxu0
  %255 = vmatprep.mubr.bf16.mxu0 0
  %256 = vmatmul.mubr.bf16.gmra.mrb[0].mxu0 %v138
  %v257 = vpop.f32.mrb[0].mxu0
  %v258 = vadd.f32 0.0, %v257
  %v259 = vpop.f32.mrb[0].mxu0
  %v260 = vpop.f32.mrb[0].mxu0
  %v261 = vadd.f32 0.0, %v260
  %v262 = vpop.f32.mrb[0].mxu0
  %263 = vmatprep.mubr.bf16.mxu0 0
  %264 = vmatmul.mubr.bf16.gmra.mrb[0].mxu0 %v139
  %v265 = vpop.f32.mrb[0].mxu0
  %v266 = vadd.f32 0.0, %v265
  %v267 = vpop.f32.mrb[0].mxu0
  %v268 = vpop.f32.mrb[0].mxu0
  %v269 = vadd.f32 0.0, %v268
  %v270 = vpop.f32.mrb[0].mxu0
  %271 = vmatprep.mubr.bf16.mxu0 0
  %272 = vmatmul.mubr.bf16.gmra.mrb[0].mxu0 %v140
  %v273 = vpop.f32.mrb[0].mxu0
  %v274 = vadd.f32 0.0, %v273
  %v275 = vpop.f32.mrb[0].mxu0
  %v276 = vpop.f32.mrb[0].mxu0
  %v277 = vadd.f32 0.0, %v276
  %v278 = vpop.f32.mrb[0].mxu0
  %279 = vmatprep.mubr.bf16.mxu0 0
  %280 = vmatmul.mubr.bf16.gmra.mrb[0].mxu0 %v141
  %v281 = vpop.f32.mrb[0].mxu0
  %v282 = vadd.f32 0.0, %v281
  %v283 = vpop.f32.mrb[0].mxu0
  %v284 = vpop.f32.mrb[0].mxu0
  %v285 = vadd.f32 0.0, %v284
  %v286 = vpop.f32.mrb[0].mxu0
  %287 = vmatprep.mubr.bf16.mxu0 0
  %288 = vmatmul.mubr.bf16.gmra.mrb[0].mxu0 %v142
  %v289 = vpop.f32.mrb[0].mxu0
  %v290 = vadd.f32 0.0, %v289
  %v291 = vpop.f32.mrb[0].mxu0
  %v292 = vpop.f32.mrb[0].mxu0
  %v293 = vadd.f32 0.0, %v292
  %v294 = vpop.f32.mrb[0].mxu0
  %295 = vdwg.mxu0
  %v296 = vadd.f32 %v51, %v234
  %v297 = vadd.f32 %v52, %v237
  %v298 = vadd.f32 %v53, %v242
  %v299 = vadd.f32 %v54, %v245
  %v300 = vadd.f32 %v55, %v250
  %v301 = vadd.f32 %v56, %v253
  %v302 = vadd.f32 %v57, %v258
  %v303 = vadd.f32 %v58, %v261
  %v304 = vadd.f32 %v59, %v266
  %v305 = vadd.f32 %v60, %v269
  %v306 = vadd.f32 %v61, %v274
  %v307 = vadd.f32 %v62, %v277
  %v308 = vadd.f32 %v63, %v282
  %v309 = vadd.f32 %v64, %v285
  %v310 = vadd.f32 %v65, %v290
  %v311 = vadd.f32 %v66, %v293
  %312 = vst [vmem:[#allocation2] sm:$0xff] %v296
  %313 = vst [vmem:[#allocation2 + $0x8] sm:$0xff] %v297
  %314 = vst [vmem:[#allocation2 + $0x10] sm:$0xff] %v298
  %315 = vst [vmem:[#allocation2 + $0x18] sm:$0xff] %v299
  %316 = vst [vmem:[#allocation2 + $0x20] sm:$0xff] %v300
  %317 = vst [vmem:[#allocation2 + $0x28] sm:$0xff] %v301
  %318 = vst [vmem:[#allocation2 + $0x30] sm:$0xff] %v302
  %319 = vst [vmem:[#allocation2 + $0x38] sm:$0xff] %v303
  %320 = vst [vmem:[#allocation2 + $0x40] sm:$0xff] %v304
  %321 = vst [vmem:[#allocation2 + $0x48] sm:$0xff] %v305
  %322 = vst [vmem:[#allocation2 + $0x50] sm:$0xff] %v306
  %323 = vst [vmem:[#allocation2 + $0x58] sm:$0xff] %v307
  %324 = vst [vmem:[#allocation2 + $0x60] sm:$0xff] %v308
  %325 = vst [vmem:[#allocation2 + $0x68] sm:$0xff] %v309
  %326 = vst [vmem:[#allocation2 + $0x70] sm:$0xff] %v310
  %327 = vst [vmem:[#allocation2 + $0x78] sm:$0xff] %v311
  // Predicated region
  $region38: #{graphsage_forward.5} parent=0 // pred_check
    %p328 = pneg %p30
  $region39: #{graphsage_forward.5} parent=0 // pred_check_branch
    %330 = sbr.rel (%p328) target = $region41
  $region40: #{graphsage_forward.5} parent=0 // pred_region
    %s331 = smul.u32 0, 128
    %s332 = sshra.s32 %s331, 3
    %s333 = sand.u32 %s331, 7
    %s334 = smul.addr %s332, 4
    %s335 = scalar_lea.vmem %s1, %s334
    %v336 = vld [vmem:[%s335] sm:$0xf]
    %v337 = vld [vmem:[%s335 + $0x4] sm:$0xf]
    %v338 = vld [vmem:[%s335 + $0x8] sm:$0xf]
    %v339 = vld [vmem:[%s335 + $0xc] sm:$0xf]
    %v340 = vld [vmem:[%s335 + $0x10] sm:$0xf]
    %v341 = vld [vmem:[%s335 + $0x14] sm:$0xf]
    %v342 = vld [vmem:[%s335 + $0x18] sm:$0xf]
    %v343 = vld [vmem:[%s335 + $0x1c] sm:$0xf]
    %v344 = vld [vmem:[%s335 + $0x20] sm:$0xf]
    %v345 = vld [vmem:[%s335 + $0x24] sm:$0xf]
    %v346 = vld [vmem:[%s335 + $0x28] sm:$0xf]
    %v347 = vld [vmem:[%s335 + $0x2c] sm:$0xf]
    %v348 = vld [vmem:[%s335 + $0x30] sm:$0xf]
    %v349 = vld [vmem:[%s335 + $0x34] sm:$0xf]
    %v350 = vld [vmem:[%s335 + $0x38] sm:$0xf]
    %v351 = vld [vmem:[%s335 + $0x3c] sm:$0xf]
    %v352 = vunpack.c.l.bf16 %v336
    %v353 = vunpack.c.l.bf16 %v337
    %v354 = vunpack.c.l.bf16 %v338
    %v355 = vunpack.c.l.bf16 %v339
    %v356 = vunpack.c.l.bf16 %v340
    %v357 = vunpack.c.l.bf16 %v341
    %v358 = vunpack.c.l.bf16 %v342
    %v359 = vunpack.c.l.bf16 %v343
    %v360 = vunpack.c.l.bf16 %v344
    %v361 = vunpack.c.l.bf16 %v345
    %v362 = vunpack.c.l.bf16 %v346
    %v363 = vunpack.c.l.bf16 %v347
    %v364 = vunpack.c.l.bf16 %v348
    %v365 = vunpack.c.l.bf16 %v349
    %v366 = vunpack.c.l.bf16 %v350
    %v367 = vunpack.c.l.bf16 %v351
    %s368 = scalar_lea.vmem %s2, %s331
    %v369 = vld [vmem:[%s368] sm:$0xff]
    %v370 = vld [vmem:[%s368 + $0x8] sm:$0xff]
    %v371 = vld [vmem:[%s368 + $0x10] sm:$0xff]
    %v372 = vld [vmem:[%s368 + $0x18] sm:$0xff]
    %v373 = vld [vmem:[%s368 + $0x20] sm:$0xff]
    %v374 = vld [vmem:[%s368 + $0x28] sm:$0xff]
    %v375 = vld [vmem:[%s368 + $0x30] sm:$0xff]
    %v376 = vld [vmem:[%s368 + $0x38] sm:$0xff]
    %v377 = vld [vmem:[%s368 + $0x40] sm:$0xff]
    %v378 = vld [vmem:[%s368 + $0x48] sm:$0xff]
    %v379 = vld [vmem:[%s368 + $0x50] sm:$0xff]
    %v380 = vld [vmem:[%s368 + $0x58] sm:$0xff]
    %v381 = vld [vmem:[%s368 + $0x60] sm:$0xff]
    %v382 = vld [vmem:[%s368 + $0x68] sm:$0xff]
    %v383 = vld [vmem:[%s368 + $0x70] sm:$0xff]
    %v384 = vld [vmem:[%s368 + $0x78] sm:$0xff]
    %v385 = vld [vmem:[#allocation2] sm:$0xff]
    %v386 = vld [vmem:[#allocation2 + $0x8] sm:$0xff]
    %v387 = vld [vmem:[#allocation2 + $0x10] sm:$0xff]
    %v388 = vld [vmem:[#allocation2 + $0x18] sm:$0xff]
    %v389 = vld [vmem:[#allocation2 + $0x20] sm:$0xff]
    %v390 = vld [vmem:[#allocation2 + $0x28] sm:$0xff]
    %v391 = vld [vmem:[#allocation2 + $0x30] sm:$0xff]
    %v392 = vld [vmem:[#allocation2 + $0x38] sm:$0xff]
    %v393 = vld [vmem:[#allocation2 + $0x40] sm:$0xff]
    %v394 = vld [vmem:[#allocation2 + $0x48] sm:$0xff]
    %v395 = vld [vmem:[#allocation2 + $0x50] sm:$0xff]
    %v396 = vld [vmem:[#allocation2 + $0x58] sm:$0xff]
    %v397 = vld [vmem:[#allocation2 + $0x60] sm:$0xff]
    %v398 = vld [vmem:[#allocation2 + $0x68] sm:$0xff]
    %v399 = vld [vmem:[#allocation2 + $0x70] sm:$0xff]
    %v400 = vld [vmem:[#allocation2 + $0x78] sm:$0xff]
    %402 = vset.pattern.permute.xlu0 0
    %403 = vperm.xlu0 %402, %v369
    %v404 = vpop.permute.xlu0 %403
    %407 = vset.pattern.permute.xlu0 0
    %408 = vperm.xlu0 %407, %v370
    %v409 = vpop.permute.xlu0 %408
    %412 = vset.pattern.permute.xlu0 0
    %413 = vperm.xlu0 %412, %v371
    %v414 = vpop.permute.xlu0 %413
    %417 = vset.pattern.permute.xlu0 0
    %418 = vperm.xlu0 %417, %v372
    %v419 = vpop.permute.xlu0 %418
    %422 = vset.pattern.permute.xlu0 0
    %423 = vperm.xlu0 %422, %v373
    %v424 = vpop.permute.xlu0 %423
    %427 = vset.pattern.permute.xlu0 0
    %428 = vperm.xlu0 %427, %v374
    %v429 = vpop.permute.xlu0 %428
    %432 = vset.pattern.permute.xlu0 0
    %433 = vperm.xlu0 %432, %v375
    %v434 = vpop.permute.xlu0 %433
    %437 = vset.pattern.permute.xlu0 0
    %438 = vperm.xlu0 %437, %v376
    %v439 = vpop.permute.xlu0 %438
    %442 = vset.pattern.permute.xlu0 0
    %443 = vperm.xlu0 %442, %v377
    %v444 = vpop.permute.xlu0 %443
    %447 = vset.pattern.permute.xlu0 0
    %448 = vperm.xlu0 %447, %v378
    %v449 = vpop.permute.xlu0 %448
    %452 = vset.pattern.permute.xlu0 0
    %453 = vperm.xlu0 %452, %v379
    %v454 = vpop.permute.xlu0 %453
    %457 = vset.pattern.permute.xlu0 0
    %458 = vperm.xlu0 %457, %v380
    %v459 = vpop.permute.xlu0 %458
    %462 = vset.pattern.permute.xlu0 0
    %463 = vperm.xlu0 %462, %v381
    %v464 = vpop.permute.xlu0 %463
    %467 = vset.pattern.permute.xlu0 0
    %468 = vperm.xlu0 %467, %v382
    %v469 = vpop.permute.xlu0 %468
    %472 = vset.pattern.permute.xlu0 0
    %473 = vperm.xlu0 %472, %v383
    %v474 = vpop.permute.xlu0 %473
    %477 = vset.pattern.permute.xlu0 0
    %478 = vperm.xlu0 %477, %v384
    %v479 = vpop.permute.xlu0 %478
    %v481 = vmul.f32 %v385, %v404
    %v482 = vmul.f32 %v386, %v409
    %v483 = vmul.f32 %v387, %v414
    %v484 = vmul.f32 %v388, %v419
    %v485 = vmul.f32 %v389, %v424
    %v486 = vmul.f32 %v390, %v429
    %v487 = vmul.f32 %v391, %v434
    %v488 = vmul.f32 %v392, %v439
    %v489 = vmul.f32 %v393, %v444
    %v490 = vmul.f32 %v394, %v449
    %v491 = vmul.f32 %v395, %v454
    %v492 = vmul.f32 %v396, %v459
    %v493 = vmul.f32 %v397, %v464
    %v494 = vmul.f32 %v398, %v469
    %v495 = vmul.f32 %v399, %v474
    %v496 = vmul.f32 %v400, %v479
    %v497 = vld [vmem:[%s3] sm:$0xff]
    %v498 = vld [vmem:[%s3 + $0x8] sm:$0xff]
    %v499 = vld [vmem:[%s3 + $0x10] sm:$0xff]
    %v500 = vld [vmem:[%s3 + $0x18] sm:$0xff]
    %v501 = vld [vmem:[%s3 + $0x20] sm:$0xff]
    %v502 = vld [vmem:[%s3 + $0x28] sm:$0xff]
    %v503 = vld [vmem:[%s3 + $0x30] sm:$0xff]
    %v504 = vld [vmem:[%s3 + $0x38] sm:$0xff]
    %v505 = vld [vmem:[%s3 + $0x40] sm:$0xff]
    %v506 = vld [vmem:[%s3 + $0x48] sm:$0xff]
    %v507 = vld [vmem:[%s3 + $0x50] sm:$0xff]
    %v508 = vld [vmem:[%s3 + $0x58] sm:$0xff]
    %v509 = vld [vmem:[%s3 + $0x60] sm:$0xff]
    %v510 = vld [vmem:[%s3 + $0x68] sm:$0xff]
    %v511 = vld [vmem:[%s3 + $0x70] sm:$0xff]
    %v512 = vld [vmem:[%s3 + $0x78] sm:$0xff]
    %v513 = vld [vmem:[%s4] sm:$0xff]
    %v514 = vld [vmem:[%s4 + $0x8] sm:$0xff]
    %v515 = vld [vmem:[%s4 + $0x10] sm:$0xff]
    %v516 = vld [vmem:[%s4 + $0x18] sm:$0xff]
    %v517 = vld [vmem:[%s4 + $0x20] sm:$0xff]
    %v518 = vld [vmem:[%s4 + $0x28] sm:$0xff]
    %v519 = vld [vmem:[%s4 + $0x30] sm:$0xff]
    %v520 = vld [vmem:[%s4 + $0x38] sm:$0xff]
    %v521 = vld [vmem:[%s4 + $0x40] sm:$0xff]
    %v522 = vld [vmem:[%s4 + $0x48] sm:$0xff]
    %v523 = vld [vmem:[%s4 + $0x50] sm:$0xff]
    %v524 = vld [vmem:[%s4 + $0x58] sm:$0xff]
    %v525 = vld [vmem:[%s4 + $0x60] sm:$0xff]
    %v526 = vld [vmem:[%s4 + $0x68] sm:$0xff]
    %v527 = vld [vmem:[%s4 + $0x70] sm:$0xff]
    %v528 = vld [vmem:[%s4 + $0x78] sm:$0xff]
    %529 = vmatprep.subr.mxu0 0.0
    %530 = vmatpush1.msra.mxu0 %v513
    %531 = vmatprep.subr.mxu0 0.0
    %532 = vmatpush1.msra.mxu0 %v514
    %533 = vmatprep.subr.mxu0 0.0
    %534 = vmatpush1.msra.mxu0 %v515
    %535 = vmatprep.subr.mxu0 0.0
    %536 = vmatpush1.msra.mxu0 %v516
    %537 = vmatprep.subr.mxu0 0.0
    %538 = vmatpush1.msra.mxu0 %v517
    %539 = vmatprep.subr.mxu0 0.0
    %540 = vmatpush1.msra.mxu0 %v518
    %541 = vmatprep.subr.mxu0 0.0
    %542 = vmatpush1.msra.mxu0 %v519
    %543 = vmatprep.subr.mxu0 0.0
    %544 = vmatpush1.msra.mxu0 %v520
    %545 = vmatprep.subr.mxu0 0.0
    %546 = vmatpush1.msra.mxu0 %v521
    %547 = vmatprep.subr.mxu0 0.0
    %548 = vmatpush1.msra.mxu0 %v522
    %549 = vmatprep.subr.mxu0 0.0
    %550 = vmatpush1.msra.mxu0 %v523
    %551 = vmatprep.subr.mxu0 0.0
    %552 = vmatpush1.msra.mxu0 %v524
    %553 = vmatprep.subr.mxu0 0.0
    %554 = vmatpush1.msra.mxu0 %v525
    %555 = vmatprep.subr.mxu0 0.0
    %556 = vmatpush1.msra.mxu0 %v526
    %557 = vmatprep.subr.mxu0 0.0
    %558 = vmatpush1.msra.mxu0 %v527
    %559 = vmatprep.subr.mxu0 0.0
    %560 = vmatpush1.msra.mxu0 %v528
    %561 = vmatprep.subr.mxu0 0.0
    %562 = vmatpush1.msra.mxu0 0.0
    %563 = vmatprep.subr.mxu0 0.0
    %564 = vmatpush1.msra.mxu0 0.0
    %565 = vmatprep.subr.mxu0 0.0
    %566 = vmatpush1.msra.mxu0 0.0
    %567 = vmatprep.subr.mxu0 0.0
    %568 = vmatpush1.msra.mxu0 0.0
    %569 = vmatprep.subr.mxu0 0.0
    %570 = vmatpush1.msra.mxu0 0.0
    %571 = vmatprep.subr.mxu0 0.0
    %572 = vmatpush1.msra.mxu0 0.0
    %573 = vmatprep.subr.mxu0 0.0
    %574 = vmatpush1.msra.mxu0 0.0
    %575 = vmatprep.subr.mxu0 0.0
    %576 = vmatpush1.msra.mxu0 0.0
    %577 = vmatprep.subr.mxu0 0.0
    %578 = vmatpush1.msra.mxu0 0.0
    %579 = vmatprep.subr.mxu0 0.0
    %580 = vmatpush1.msra.mxu0 0.0
    %581 = vmatprep.subr.mxu0 0.0
    %582 = vmatpush1.msra.mxu0 0.0
    %583 = vmatprep.subr.mxu0 0.0
    %584 = vmatpush1.msra.mxu0 0.0
    %585 = vmatprep.subr.mxu0 0.0
    %586 = vmatpush1.msra.mxu0 0.0
    %587 = vmatprep.subr.mxu0 0.0
    %588 = vmatpush1.msra.mxu0 0.0
    %589 = vmatprep.subr.mxu0 0.0
    %590 = vmatpush1.msra.mxu0 0.0
    %591 = vmatprep.subr.mxu0 0.0
    %592 = vmatpush1.msra.mxu0 0.0
    %593 = vmatprep.mubr.f32.mxu0 0.0
    %594 = vmatmul.mubr.f32.gmra.mrb[0].mxu0 %v352
    %v595 = vpop.f32.mrb[0].mxu0
    %v596 = vadd.f32 0.0, %v595
    %v597 = vpop.f32.mrb[0].mxu0
    %598 = vmatprep.mubr.f32.mxu0 0.0
    %599 = vmatmul.mubr.f32.gmra.mrb[0].mxu0 %v353
    %v600 = vpop.f32.mrb[0].mxu0
    %v601 = vadd.f32 0.0, %v600
    %v602 = vpop.f32.mrb[0].mxu0
    %603 = vmatprep.mubr.f32.mxu0 0.0
    %604 = vmatmul.mubr.f32.gmra.mrb[0].mxu0 %v354
    %v605 = vpop.f32.mrb[0].mxu0
    %v606 = vadd.f32 0.0, %v605
    %v607 = vpop.f32.mrb[0].mxu0
    %608 = vmatprep.mubr.f32.mxu0 0.0
    %609 = vmatmul.mubr.f32.gmra.mrb[0].mxu0 %v355
    %v610 = vpop.f32.mrb[0].mxu0
    %v611 = vadd.f32 0.0, %v610
    %v612 = vpop.f32.mrb[0].mxu0
    %613 = vmatprep.mubr.f32.mxu0 0.0
    %614 = vmatmul.mubr.f32.gmra.mrb[0].mxu0 %v356
    %v615 = vpop.f32.mrb[0].mxu0
    %v616 = vadd.f32 0.0, %v615
    %v617 = vpop.f32.mrb[0].mxu0
    %618 = vmatprep.mubr.f32.mxu0 0.0
    %619 = vmatmul.mubr.f32.gmra.mrb[0].mxu0 %v357
    %v620 = vpop.f32.mrb[0].mxu0
    %v621 = vadd.f32 0.0, %v620
    %v622 = vpop.f32.mrb[0].mxu0
    %623 = vmatprep.mubr.f32.mxu0 0.0
    %624 = vmatmul.mubr.f32.gmra.mrb[0].mxu0 %v358
    %v625 = vpop.f32.mrb[0].mxu0
    %v626 = vadd.f32 0.0, %v625
    %v627 = vpop.f32.mrb[0].mxu0
    %628 = vmatprep.mubr.f32.mxu0 0.0
    %629 = vmatmul.mubr.f32.gmra.mrb[0].mxu0 %v359
    %v630 = vpop.f32.mrb[0].mxu0
    %v631 = vadd.f32 0.0, %v630
    %v632 = vpop.f32.mrb[0].mxu0
    %633 = vmatprep.mubr.f32.mxu0 0.0
    %634 = vmatmul.mubr.f32.gmra.mrb[0].mxu0 %v360
    %v635 = vpop.f32.mrb[0].mxu0
    %v636 = vadd.f32 0.0, %v635
    %v637 = vpop.f32.mrb[0].mxu0
    %638 = vmatprep.mubr.f32.mxu0 0.0
    %639 = vmatmul.mubr.f32.gmra.mrb[0].mxu0 %v361
    %v640 = vpop.f32.mrb[0].mxu0
    %v641 = vadd.f32 0.0, %v640
    %v642 = vpop.f32.mrb[0].mxu0
    %643 = vmatprep.mubr.f32.mxu0 0.0
    %644 = vmatmul.mubr.f32.gmra.mrb[0].mxu0 %v362
    %v645 = vpop.f32.mrb[0].mxu0
    %v646 = vadd.f32 0.0, %v645
    %v647 = vpop.f32.mrb[0].mxu0
    %648 = vmatprep.mubr.f32.mxu0 0.0
    %649 = vmatmul.mubr.f32.gmra.mrb[0].mxu0 %v363
    %v650 = vpop.f32.mrb[0].mxu0
    %v651 = vadd.f32 0.0, %v650
    %v652 = vpop.f32.mrb[0].mxu0
    %653 = vmatprep.mubr.f32.mxu0 0.0
    %654 = vmatmul.mubr.f32.gmra.mrb[0].mxu0 %v364
    %v655 = vpop.f32.mrb[0].mxu0
    %v656 = vadd.f32 0.0, %v655
    %v657 = vpop.f32.mrb[0].mxu0
    %658 = vmatprep.mubr.f32.mxu0 0.0
    %659 = vmatmul.mubr.f32.gmra.mrb[0].mxu0 %v365
    %v660 = vpop.f32.mrb[0].mxu0
    %v661 = vadd.f32 0.0, %v660
    %v662 = vpop.f32.mrb[0].mxu0
    %663 = vmatprep.mubr.f32.mxu0 0.0
    %664 = vmatmul.mubr.f32.gmra.mrb[0].mxu0 %v366
    %v665 = vpop.f32.mrb[0].mxu0
    %v666 = vadd.f32 0.0, %v665
    %v667 = vpop.f32.mrb[0].mxu0
    %668 = vmatprep.mubr.f32.mxu0 0.0
    %669 = vmatmul.mubr.f32.gmra.mrb[0].mxu0 %v367
    %v670 = vpop.f32.mrb[0].mxu0
    %v671 = vadd.f32 0.0, %v670
    %v672 = vpop.f32.mrb[0].mxu0
    %673 = vdwg.mxu0
    %674 = vmatprep.subr.mxu0 0.0
    %675 = vmatpush1.msra.mxu0 %v497
    %676 = vmatprep.subr.mxu0 0.0
    %677 = vmatpush1.msra.mxu0 %v498
    %678 = vmatprep.subr.mxu0 0.0
    %679 = vmatpush1.msra.mxu0 %v499
    %680 = vmatprep.subr.mxu0 0.0
    %681 = vmatpush1.msra.mxu0 %v500
    %682 = vmatprep.subr.mxu0 0.0
    %683 = vmatpush1.msra.mxu0 %v501
    %684 = vmatprep.subr.mxu0 0.0
    %685 = vmatpush1.msra.mxu0 %v502
    %686 = vmatprep.subr.mxu0 0.0
    %687 = vmatpush1.msra.mxu0 %v503
    %688 = vmatprep.subr.mxu0 0.0
    %689 = vmatpush1.msra.mxu0 %v504
    %690 = vmatprep.subr.mxu0 0.0
    %691 = vmatpush1.msra.mxu0 %v505
    %692 = vmatprep.subr.mxu0 0.0
    %693 = vmatpush1.msra.mxu0 %v506
    %694 = vmatprep.subr.mxu0 0.0
    %695 = vmatpush1.msra.mxu0 %v507
    %696 = vmatprep.subr.mxu0 0.0
    %697 = vmatpush1.msra.mxu0 %v508
    %698 = vmatprep.subr.mxu0 0.0
    %699 = vmatpush1.msra.mxu0 %v509
    %700 = vmatprep.subr.mxu0 0.0
    %701 = vmatpush1.msra.mxu0 %v510
    %702 = vmatprep.subr.mxu0 0.0
    %703 = vmatpush1.msra.mxu0 %v511
    %704 = vmatprep.subr.mxu0 0.0
    %705 = vmatpush1.msra.mxu0 %v512
    %706 = vmatprep.subr.mxu0 0.0
    %707 = vmatpush1.msra.mxu0 0.0
    %708 = vmatprep.subr.mxu0 0.0
    %709 = vmatpush1.msra.mxu0 0.0
    %710 = vmatprep.subr.mxu0 0.0
    %711 = vmatpush1.msra.mxu0 0.0
    %712 = vmatprep.subr.mxu0 0.0
    %713 = vmatpush1.msra.mxu0 0.0
    %714 = vmatprep.subr.mxu0 0.0
    %715 = vmatpush1.msra.mxu0 0.0
    %716 = vmatprep.subr.mxu0 0.0
    %717 = vmatpush1.msra.mxu0 0.0
    %718 = vmatprep.subr.mxu0 0.0
    %719 = vmatpush1.msra.mxu0 0.0
    %720 = vmatprep.subr.mxu0 0.0
    %721 = vmatpush1.msra.mxu0 0.0
    %722 = vmatprep.subr.mxu0 0.0
    %723 = vmatpush1.msra.mxu0 0.0
    %724 = vmatprep.subr.mxu0 0.0
    %725 = vmatpush1.msra.mxu0 0.0
    %726 = vmatprep.subr.mxu0 0.0
    %727 = vmatpush1.msra.mxu0 0.0
    %728 = vmatprep.subr.mxu0 0.0
    %729 = vmatpush1.msra.mxu0 0.0
    %730 = vmatprep.subr.mxu0 0.0
    %731 = vmatpush1.msra.mxu0 0.0
    %732 = vmatprep.subr.mxu0 0.0
    %733 = vmatpush1.msra.mxu0 0.0
    %734 = vmatprep.subr.mxu0 0.0
    %735 = vmatpush1.msra.mxu0 0.0
    %736 = vmatprep.subr.mxu0 0.0
    %737 = vmatpush1.msra.mxu0 0.0
    %738 = vmatprep.mubr.f32.mxu0 0.0
    %739 = vmatmul.mubr.f32.gmra.mrb[0].mxu0 %v481
    %v740 = vpop.f32.mrb[0].mxu0
    %v741 = vadd.f32 %v596, %v740
    %v742 = vpop.f32.mrb[0].mxu0
    %743 = vmatprep.mubr.f32.mxu0 0.0
    %744 = vmatmul.mubr.f32.gmra.mrb[0].mxu0 %v482
    %v745 = vpop.f32.mrb[0].mxu0
    %v746 = vadd.f32 %v601, %v745
    %v747 = vpop.f32.mrb[0].mxu0
    %748 = vmatprep.mubr.f32.mxu0 0.0
    %749 = vmatmul.mubr.f32.gmra.mrb[0].mxu0 %v483
    %v750 = vpop.f32.mrb[0].mxu0
    %v751 = vadd.f32 %v606, %v750
    %v752 = vpop.f32.mrb[0].mxu0
    %753 = vmatprep.mubr.f32.mxu0 0.0
    %754 = vmatmul.mubr.f32.gmra.mrb[0].mxu0 %v484
    %v755 = vpop.f32.mrb[0].mxu0
    %v756 = vadd.f32 %v611, %v755
    %v757 = vpop.f32.mrb[0].mxu0
    %758 = vmatprep.mubr.f32.mxu0 0.0
    %759 = vmatmul.mubr.f32.gmra.mrb[0].mxu0 %v485
    %v760 = vpop.f32.mrb[0].mxu0
    %v761 = vadd.f32 %v616, %v760
    %v762 = vpop.f32.mrb[0].mxu0
    %763 = vmatprep.mubr.f32.mxu0 0.0
    %764 = vmatmul.mubr.f32.gmra.mrb[0].mxu0 %v486
    %v765 = vpop.f32.mrb[0].mxu0
    %v766 = vadd.f32 %v621, %v765
    %v767 = vpop.f32.mrb[0].mxu0
    %768 = vmatprep.mubr.f32.mxu0 0.0
    %769 = vmatmul.mubr.f32.gmra.mrb[0].mxu0 %v487
    %v770 = vpop.f32.mrb[0].mxu0
    %v771 = vadd.f32 %v626, %v770
    %v772 = vpop.f32.mrb[0].mxu0
    %773 = vmatprep.mubr.f32.mxu0 0.0
    %774 = vmatmul.mubr.f32.gmra.mrb[0].mxu0 %v488
    %v775 = vpop.f32.mrb[0].mxu0
    %v776 = vadd.f32 %v631, %v775
    %v777 = vpop.f32.mrb[0].mxu0
    %778 = vmatprep.mubr.f32.mxu0 0.0
    %779 = vmatmul.mubr.f32.gmra.mrb[0].mxu0 %v489
    %v780 = vpop.f32.mrb[0].mxu0
    %v781 = vadd.f32 %v636, %v780
    %v782 = vpop.f32.mrb[0].mxu0
    %783 = vmatprep.mubr.f32.mxu0 0.0
    %784 = vmatmul.mubr.f32.gmra.mrb[0].mxu0 %v490
    %v785 = vpop.f32.mrb[0].mxu0
    %v786 = vadd.f32 %v641, %v785
    %v787 = vpop.f32.mrb[0].mxu0
    %788 = vmatprep.mubr.f32.mxu0 0.0
    %789 = vmatmul.mubr.f32.gmra.mrb[0].mxu0 %v491
    %v790 = vpop.f32.mrb[0].mxu0
    %v791 = vadd.f32 %v646, %v790
    %v792 = vpop.f32.mrb[0].mxu0
    %793 = vmatprep.mubr.f32.mxu0 0.0
    %794 = vmatmul.mubr.f32.gmra.mrb[0].mxu0 %v492
    %v795 = vpop.f32.mrb[0].mxu0
    %v796 = vadd.f32 %v651, %v795
    %v797 = vpop.f32.mrb[0].mxu0
    %798 = vmatprep.mubr.f32.mxu0 0.0
    %799 = vmatmul.mubr.f32.gmra.mrb[0].mxu0 %v493
    %v800 = vpop.f32.mrb[0].mxu0
    %v801 = vadd.f32 %v656, %v800
    %v802 = vpop.f32.mrb[0].mxu0
    %803 = vmatprep.mubr.f32.mxu0 0.0
    %804 = vmatmul.mubr.f32.gmra.mrb[0].mxu0 %v494
    %v805 = vpop.f32.mrb[0].mxu0
    %v806 = vadd.f32 %v661, %v805
    %v807 = vpop.f32.mrb[0].mxu0
    %808 = vmatprep.mubr.f32.mxu0 0.0
    %809 = vmatmul.mubr.f32.gmra.mrb[0].mxu0 %v495
    %v810 = vpop.f32.mrb[0].mxu0
    %v811 = vadd.f32 %v666, %v810
    %v812 = vpop.f32.mrb[0].mxu0
    %813 = vmatprep.mubr.f32.mxu0 0.0
    %814 = vmatmul.mubr.f32.gmra.mrb[0].mxu0 %v496
    %v815 = vpop.f32.mrb[0].mxu0
    %v816 = vadd.f32 %v671, %v815
    %v817 = vpop.f32.mrb[0].mxu0
    %818 = vdwg.mxu0
    %v819 = vld [vmem:[%s5] sm:$0x1]
    %v821 = vlaneseq
    %v822 = vshrl.u32 %v821, 7
    %v823 = vsub.s32 0, %v822
    %v824 = vrot.slane %v819, %v823
    %v826 = vadd.f32 %v741, %v824
    %v827 = vadd.f32 %v746, %v824
    %v828 = vadd.f32 %v751, %v824
    %v829 = vadd.f32 %v756, %v824
    %v830 = vadd.f32 %v761, %v824
    %v831 = vadd.f32 %v766, %v824
    %v832 = vadd.f32 %v771, %v824
    %v833 = vadd.f32 %v776, %v824
    %v834 = vadd.f32 %v781, %v824
    %v835 = vadd.f32 %v786, %v824
    %v836 = vadd.f32 %v791, %v824
    %v837 = vadd.f32 %v796, %v824
    %v838 = vadd.f32 %v801, %v824
    %v839 = vadd.f32 %v806, %v824
    %v840 = vadd.f32 %v811, %v824
    %v841 = vadd.f32 %v816, %v824
    %v842 = vmax.f32 %v826, 0.0
    %v843 = vmax.f32 %v827, 0.0
    %v844 = vmax.f32 %v828, 0.0
    %v845 = vmax.f32 %v829, 0.0
    %v846 = vmax.f32 %v830, 0.0
    %v847 = vmax.f32 %v831, 0.0
    %v848 = vmax.f32 %v832, 0.0
    %v849 = vmax.f32 %v833, 0.0
    %v850 = vmax.f32 %v834, 0.0
    %v851 = vmax.f32 %v835, 0.0
    %v852 = vmax.f32 %v836, 0.0
    %v853 = vmax.f32 %v837, 0.0
    %v854 = vmax.f32 %v838, 0.0
    %v855 = vmax.f32 %v839, 0.0
    %v856 = vmax.f32 %v840, 0.0
    %v857 = vmax.f32 %v841, 0.0
    %v858 = vld [vmem:[%s6] sm:$0xff]
    %v859 = vld [vmem:[%s6 + $0x8] sm:$0xff]
    %v860 = vld [vmem:[%s6 + $0x10] sm:$0xff]
    %v861 = vld [vmem:[%s6 + $0x18] sm:$0xff]
    %v862 = vld [vmem:[%s6 + $0x20] sm:$0xff]
    %v863 = vld [vmem:[%s6 + $0x28] sm:$0xff]
    %v864 = vld [vmem:[%s6 + $0x30] sm:$0xff]
    %v865 = vld [vmem:[%s6 + $0x38] sm:$0xff]
    %v866 = vld [vmem:[%s6 + $0x40] sm:$0xff]
    %v867 = vld [vmem:[%s6 + $0x48] sm:$0xff]
    %v868 = vld [vmem:[%s6 + $0x50] sm:$0xff]
    %v869 = vld [vmem:[%s6 + $0x58] sm:$0xff]
    %v870 = vld [vmem:[%s6 + $0x60] sm:$0xff]
    %v871 = vld [vmem:[%s6 + $0x68] sm:$0xff]
    %v872 = vld [vmem:[%s6 + $0x70] sm:$0xff]
    %v873 = vld [vmem:[%s6 + $0x78] sm:$0xff]
    %v874 = vld [vmem:[%s7] sm:$0x1]
    %v876 = vlaneseq
    %v877 = vshrl.u32 %v876, 7
    %v878 = vsub.s32 0, %v877
    %v879 = vrot.slane %v874, %v878
    %881 = vmatprep.subr.mxu0 0.0
    %882 = vmatpush1.msra.mxu0 %v858
    %883 = vmatprep.subr.mxu0 0.0
    %884 = vmatpush1.msra.mxu0 %v859
    %885 = vmatprep.subr.mxu0 0.0
    %886 = vmatpush1.msra.mxu0 %v860
    %887 = vmatprep.subr.mxu0 0.0
    %888 = vmatpush1.msra.mxu0 %v861
    %889 = vmatprep.subr.mxu0 0.0
    %890 = vmatpush1.msra.mxu0 %v862
    %891 = vmatprep.subr.mxu0 0.0
    %892 = vmatpush1.msra.mxu0 %v863
    %893 = vmatprep.subr.mxu0 0.0
    %894 = vmatpush1.msra.mxu0 %v864
    %895 = vmatprep.subr.mxu0 0.0
    %896 = vmatpush1.msra.mxu0 %v865
    %897 = vmatprep.subr.mxu0 0.0
    %898 = vmatpush1.msra.mxu0 %v866
    %899 = vmatprep.subr.mxu0 0.0
    %900 = vmatpush1.msra.mxu0 %v867
    %901 = vmatprep.subr.mxu0 0.0
    %902 = vmatpush1.msra.mxu0 %v868
    %903 = vmatprep.subr.mxu0 0.0
    %904 = vmatpush1.msra.mxu0 %v869
    %905 = vmatprep.subr.mxu0 0.0
    %906 = vmatpush1.msra.mxu0 %v870
    %907 = vmatprep.subr.mxu0 0.0
    %908 = vmatpush1.msra.mxu0 %v871
    %909 = vmatprep.subr.mxu0 0.0
    %910 = vmatpush1.msra.mxu0 %v872
    %911 = vmatprep.subr.mxu0 0.0
    %912 = vmatpush1.msra.mxu0 %v873
    %913 = vmatprep.subr.mxu0 0.0
    %914 = vmatpush1.msra.mxu0 0.0
    %915 = vmatprep.subr.mxu0 0.0
    %916 = vmatpush1.msra.mxu0 0.0
    %917 = vmatprep.subr.mxu0 0.0
    %918 = vmatpush1.msra.mxu0 0.0
    %919 = vmatprep.subr.mxu0 0.0
    %920 = vmatpush1.msra.mxu0 0.0
    %921 = vmatprep.subr.mxu0 0.0
    %922 = vmatpush1.msra.mxu0 0.0
    %923 = vmatprep.subr.mxu0 0.0
    %924 = vmatpush1.msra.mxu0 0.0
    %925 = vmatprep.subr.mxu0 0.0
    %926 = vmatpush1.msra.mxu0 0.0
    %927 = vmatprep.subr.mxu0 0.0
    %928 = vmatpush1.msra.mxu0 0.0
    %929 = vmatprep.subr.mxu0 0.0
    %930 = vmatpush1.msra.mxu0 0.0
    %931 = vmatprep.subr.mxu0 0.0
    %932 = vmatpush1.msra.mxu0 0.0
    %933 = vmatprep.subr.mxu0 0.0
    %934 = vmatpush1.msra.mxu0 0.0
    %935 = vmatprep.subr.mxu0 0.0
    %936 = vmatpush1.msra.mxu0 0.0
    %937 = vmatprep.subr.mxu0 0.0
    %938 = vmatpush1.msra.mxu0 0.0
    %939 = vmatprep.subr.mxu0 0.0
    %940 = vmatpush1.msra.mxu0 0.0
    %941 = vmatprep.subr.mxu0 0.0
    %942 = vmatpush1.msra.mxu0 0.0
    %943 = vmatprep.subr.mxu0 0.0
    %944 = vmatpush1.msra.mxu0 0.0
    %945 = vmatprep.mubr.f32.mxu0 0.0
    %946 = vmatmul.mubr.f32.gmra.mrb[0].mxu0 %v842
    %v947 = vpop.f32.mrb[0].mxu0
    %v948 = vadd.f32 %v879, %v947
    %v949 = vpop.f32.mrb[0].mxu0
    %950 = vmatprep.mubr.f32.mxu0 0.0
    %951 = vmatmul.mubr.f32.gmra.mrb[0].mxu0 %v843
    %v952 = vpop.f32.mrb[0].mxu0
    %v953 = vadd.f32 %v879, %v952
    %v954 = vpop.f32.mrb[0].mxu0
    %955 = vmatprep.mubr.f32.mxu0 0.0
    %956 = vmatmul.mubr.f32.gmra.mrb[0].mxu0 %v844
    %v957 = vpop.f32.mrb[0].mxu0
    %v958 = vadd.f32 %v879, %v957
    %v959 = vpop.f32.mrb[0].mxu0
    %960 = vmatprep.mubr.f32.mxu0 0.0
    %961 = vmatmul.mubr.f32.gmra.mrb[0].mxu0 %v845
    %v962 = vpop.f32.mrb[0].mxu0
    %v963 = vadd.f32 %v879, %v962
    %v964 = vpop.f32.mrb[0].mxu0
    %965 = vmatprep.mubr.f32.mxu0 0.0
    %966 = vmatmul.mubr.f32.gmra.mrb[0].mxu0 %v846
    %v967 = vpop.f32.mrb[0].mxu0
    %v968 = vadd.f32 %v879, %v967
    %v969 = vpop.f32.mrb[0].mxu0
    %970 = vmatprep.mubr.f32.mxu0 0.0
    %971 = vmatmul.mubr.f32.gmra.mrb[0].mxu0 %v847
    %v972 = vpop.f32.mrb[0].mxu0
    %v973 = vadd.f32 %v879, %v972
    %v974 = vpop.f32.mrb[0].mxu0
    %975 = vmatprep.mubr.f32.mxu0 0.0
    %976 = vmatmul.mubr.f32.gmra.mrb[0].mxu0 %v848
    %v977 = vpop.f32.mrb[0].mxu0
    %v978 = vadd.f32 %v879, %v977
    %v979 = vpop.f32.mrb[0].mxu0
    %980 = vmatprep.mubr.f32.mxu0 0.0
    %981 = vmatmul.mubr.f32.gmra.mrb[0].mxu0 %v849
    %v982 = vpop.f32.mrb[0].mxu0
    %v983 = vadd.f32 %v879, %v982
    %v984 = vpop.f32.mrb[0].mxu0
    %985 = vmatprep.mubr.f32.mxu0 0.0
    %986 = vmatmul.mubr.f32.gmra.mrb[0].mxu0 %v850
    %v987 = vpop.f32.mrb[0].mxu0
    %v988 = vadd.f32 %v879, %v987
    %v989 = vpop.f32.mrb[0].mxu0
    %990 = vmatprep.mubr.f32.mxu0 0.0
    %991 = vmatmul.mubr.f32.gmra.mrb[0].mxu0 %v851
    %v992 = vpop.f32.mrb[0].mxu0
    %v993 = vadd.f32 %v879, %v992
    %v994 = vpop.f32.mrb[0].mxu0
    %995 = vmatprep.mubr.f32.mxu0 0.0
    %996 = vmatmul.mubr.f32.gmra.mrb[0].mxu0 %v852
    %v997 = vpop.f32.mrb[0].mxu0
    %v998 = vadd.f32 %v879, %v997
    %v999 = vpop.f32.mrb[0].mxu0
    %1000 = vmatprep.mubr.f32.mxu0 0.0
    %1001 = vmatmul.mubr.f32.gmra.mrb[0].mxu0 %v853
    %v1002 = vpop.f32.mrb[0].mxu0
    %v1003 = vadd.f32 %v879, %v1002
    %v1004 = vpop.f32.mrb[0].mxu0
    %1005 = vmatprep.mubr.f32.mxu0 0.0
    %1006 = vmatmul.mubr.f32.gmra.mrb[0].mxu0 %v854
    %v1007 = vpop.f32.mrb[0].mxu0
    %v1008 = vadd.f32 %v879, %v1007
    %v1009 = vpop.f32.mrb[0].mxu0
    %1010 = vmatprep.mubr.f32.mxu0 0.0
    %1011 = vmatmul.mubr.f32.gmra.mrb[0].mxu0 %v855
    %v1012 = vpop.f32.mrb[0].mxu0
    %v1013 = vadd.f32 %v879, %v1012
    %v1014 = vpop.f32.mrb[0].mxu0
    %1015 = vmatprep.mubr.f32.mxu0 0.0
    %1016 = vmatmul.mubr.f32.gmra.mrb[0].mxu0 %v856
    %v1017 = vpop.f32.mrb[0].mxu0
    %v1018 = vadd.f32 %v879, %v1017
    %v1019 = vpop.f32.mrb[0].mxu0
    %1020 = vmatprep.mubr.f32.mxu0 0.0
    %1021 = vmatmul.mubr.f32.gmra.mrb[0].mxu0 %v857
    %v1022 = vpop.f32.mrb[0].mxu0
    %v1023 = vadd.f32 %v879, %v1022
    %v1024 = vpop.f32.mrb[0].mxu0
    %1025 = vdwg.mxu0
    %1026 = vst [vmem:[%s8] sm:$0xff] %v948
    %1027 = vst [vmem:[%s8 + $0x8] sm:$0xff] %v953
    %1028 = vst [vmem:[%s8 + $0x10] sm:$0xff] %v958
    %1029 = vst [vmem:[%s8 + $0x18] sm:$0xff] %v963
    %1030 = vst [vmem:[%s8 + $0x20] sm:$0xff] %v968
    %1031 = vst [vmem:[%s8 + $0x28] sm:$0xff] %v973
    %1032 = vst [vmem:[%s8 + $0x30] sm:$0xff] %v978
    %1033 = vst [vmem:[%s8 + $0x38] sm:$0xff] %v983
    %1034 = vst [vmem:[%s8 + $0x40] sm:$0xff] %v988
    %1035 = vst [vmem:[%s8 + $0x48] sm:$0xff] %v993
    %1036 = vst [vmem:[%s8 + $0x50] sm:$0xff] %v998
    %1037 = vst [vmem:[%s8 + $0x58] sm:$0xff] %v1003
    %1038 = vst [vmem:[%s8 + $0x60] sm:$0xff] %v1008
    %1039 = vst [vmem:[%s8 + $0x68] sm:$0xff] %v1013
    %1040 = vst [vmem:[%s8 + $0x70] sm:$0xff] %v1018
    %1041 = vst [vmem:[%s8 + $0x78] sm:$0xff] %v1023
  $region41: #{graphsage_forward.5} parent=0 // pred_fallthru
    _
  // Predicated region
  $region42: #{graphsage_forward.5} parent=0 // pred_check
    _
  $region43: #{graphsage_forward.5} parent=0 // pred_check_branch
    %1043 = sbr.rel (0) target = $region45
  $region44: #{graphsage_forward.5} parent=0 // pred_region
    _
  $region45: #{graphsage_forward.5} parent=0 // pred_fallthru
    _
  // Predicated region
  $region46: #{graphsage_forward.5} parent=0 // pred_check
    _
  $region47: #{graphsage_forward.5} parent=0 // pred_check_branch
    %1045 = sbr.rel (0) target = $region49
  $region48: #{graphsage_forward.5} parent=0 // pred_region
    _
  $region49: #{graphsage_forward.5} parent=0 // pred_fallthru
    _

// kernel: graphsage_forward.3
$region0: #{graphsage_forward.3}
  #allocation0 [shape = 'u32[]', space=smem, size = 0x4, offset = 0x4, fixed_abs, tag = 'smem constant byte address 0x4 - core index']
  #allocation1 [shape = 'u32[144,128]{1,0:T(1,128)}', space=vmem, size = 0x12000, scoped, tag = 'internal scratch']
  #allocation2 [shape = 'f32[128,128]{1,0:T(8,128)}', space=vmem, size = 0x10000, scoped, tag = 'scratch operand']
  %s0 = inlined_call_operand.vmem [shape: bf16[128,128], index: 0, kind: input, shape index: {}]
  %s1 = inlined_call_operand.vmem [shape: bf16[128,128], index: 1, kind: input, shape index: {}]
  %s2 = inlined_call_operand.vmem [shape: f32[128,1], index: 2, kind: input, shape index: {}]
  %s3 = inlined_call_operand.vmem [shape: f32[128,128], index: 3, kind: input, shape index: {}]
  %s4 = inlined_call_operand.vmem [shape: f32[128,128], index: 4, kind: input, shape index: {}]
  %s5 = inlined_call_operand.vmem [shape: f32[1,128], index: 5, kind: input, shape index: {}]
  %s6 = inlined_call_operand.vmem [shape: bf16[128,128], index: 6, kind: output, shape index: {}]
  %s7 = sld [smem:[#allocation0]]
  $region42: #{graphsage_forward.3} parent=0
    _
  %s9 = ssub.s32 1, %s7
  %s10 = scalar_select 0, %s9, %s7
  // Predicated region
  $region2: #{graphsage_forward.3} parent=0 // pred_check
    _
  $region3: #{graphsage_forward.3} parent=0 // pred_check_branch
    %12 = sbr.rel (0) target = $region5
  $region4: #{graphsage_forward.3} parent=0 // pred_region
    _
  $region5: #{graphsage_forward.3} parent=0 // pred_fallthru
    _
  // Predicated region
  $region6: #{graphsage_forward.3} parent=0 // pred_check
    _
  $region7: #{graphsage_forward.3} parent=0 // pred_check_branch
    %14 = sbr.rel (0) target = $region9
  $region8: #{graphsage_forward.3} parent=0 // pred_region
    _
  $region9: #{graphsage_forward.3} parent=0 // pred_fallthru
    _
  // Predicated region
  $region10: #{graphsage_forward.3} parent=0 // pred_check
    _
  $region11: #{graphsage_forward.3} parent=0 // pred_check_branch
    %16 = sbr.rel (0) target = $region13
  $region12: #{graphsage_forward.3} parent=0 // pred_region
    _
  $region13: #{graphsage_forward.3} parent=0 // pred_fallthru
    _
  // Predicated region
  $region14: #{graphsage_forward.3} parent=0 // pred_check
    _
  $region15: #{graphsage_forward.3} parent=0 // pred_check_branch
    %18 = sbr.rel (0) target = $region17
  $region16: #{graphsage_forward.3} parent=0 // pred_region
    _
  $region17: #{graphsage_forward.3} parent=0 // pred_fallthru
    _
  // Predicated region
  $region18: #{graphsage_forward.3} parent=0 // pred_check
    _
  $region19: #{graphsage_forward.3} parent=0 // pred_check_branch
    %20 = sbr.rel (0) target = $region21
  $region20: #{graphsage_forward.3} parent=0 // pred_region
    _
  $region21: #{graphsage_forward.3} parent=0 // pred_fallthru
    _
  // Predicated region
  $region22: #{graphsage_forward.3} parent=0 // pred_check
    _
  $region23: #{graphsage_forward.3} parent=0 // pred_check_branch
    %22 = sbr.rel (0) target = $region25
  $region24: #{graphsage_forward.3} parent=0 // pred_region
    _
  $region25: #{graphsage_forward.3} parent=0 // pred_fallthru
    _
  %p24 = scmp.eq.s32.totalorder 0, 0
  // Predicated region
  $region26: #{graphsage_forward.3} parent=0 // pred_check
    %p25 = pneg %p24
  $region27: #{graphsage_forward.3} parent=0 // pred_check_branch
    %27 = sbr.rel (%p25) target = $region29
  $region28: #{graphsage_forward.3} parent=0 // pred_region
    %28 = vst [vmem:[#allocation2] sm:$0xff] 0.0
    %29 = vst [vmem:[#allocation2 + $0x8] sm:$0xff] 0.0
    %30 = vst [vmem:[#allocation2 + $0x10] sm:$0xff] 0.0
    %31 = vst [vmem:[#allocation2 + $0x18] sm:$0xff] 0.0
    %32 = vst [vmem:[#allocation2 + $0x20] sm:$0xff] 0.0
    %33 = vst [vmem:[#allocation2 + $0x28] sm:$0xff] 0.0
    %34 = vst [vmem:[#allocation2 + $0x30] sm:$0xff] 0.0
    %35 = vst [vmem:[#allocation2 + $0x38] sm:$0xff] 0.0
    %36 = vst [vmem:[#allocation2 + $0x40] sm:$0xff] 0.0
    %37 = vst [vmem:[#allocation2 + $0x48] sm:$0xff] 0.0
    %38 = vst [vmem:[#allocation2 + $0x50] sm:$0xff] 0.0
    %39 = vst [vmem:[#allocation2 + $0x58] sm:$0xff] 0.0
    %40 = vst [vmem:[#allocation2 + $0x60] sm:$0xff] 0.0
    %41 = vst [vmem:[#allocation2 + $0x68] sm:$0xff] 0.0
    %42 = vst [vmem:[#allocation2 + $0x70] sm:$0xff] 0.0
    %43 = vst [vmem:[#allocation2 + $0x78] sm:$0xff] 0.0
  $region29: #{graphsage_forward.3} parent=0 // pred_fallthru
    _
  %s44 = smul.u32 0, 128
  %v45 = vld [vmem:[#allocation2] sm:$0xff]
  %v46 = vld [vmem:[#allocation2 + $0x8] sm:$0xff]
  %v47 = vld [vmem:[#allocation2 + $0x10] sm:$0xff]
  %v48 = vld [vmem:[#allocation2 + $0x18] sm:$0xff]
  %v49 = vld [vmem:[#allocation2 + $0x20] sm:$0xff]
  %v50 = vld [vmem:[#allocation2 + $0x28] sm:$0xff]
  %v51 = vld [vmem:[#allocation2 + $0x30] sm:$0xff]
  %v52 = vld [vmem:[#allocation2 + $0x38] sm:$0xff]
  %v53 = vld [vmem:[#allocation2 + $0x40] sm:$0xff]
  %v54 = vld [vmem:[#allocation2 + $0x48] sm:$0xff]
  %v55 = vld [vmem:[#allocation2 + $0x50] sm:$0xff]
  %v56 = vld [vmem:[#allocation2 + $0x58] sm:$0xff]
  %v57 = vld [vmem:[#allocation2 + $0x60] sm:$0xff]
  %v58 = vld [vmem:[#allocation2 + $0x68] sm:$0xff]
  %v59 = vld [vmem:[#allocation2 + $0x70] sm:$0xff]
  %v60 = vld [vmem:[#allocation2 + $0x78] sm:$0xff]
  %v61 = vld [vmem:[%s0] sm:$0xf]
  %v62 = vld [vmem:[%s0 + $0x4] sm:$0xf]
  %v63 = vld [vmem:[%s0 + $0x8] sm:$0xf]
  %v64 = vld [vmem:[%s0 + $0xc] sm:$0xf]
  %v65 = vld [vmem:[%s0 + $0x10] sm:$0xf]
  %v66 = vld [vmem:[%s0 + $0x14] sm:$0xf]
  %v67 = vld [vmem:[%s0 + $0x18] sm:$0xf]
  %v68 = vld [vmem:[%s0 + $0x1c] sm:$0xf]
  %v69 = vld [vmem:[%s0 + $0x20] sm:$0xf]
  %v70 = vld [vmem:[%s0 + $0x24] sm:$0xf]
  %v71 = vld [vmem:[%s0 + $0x28] sm:$0xf]
  %v72 = vld [vmem:[%s0 + $0x2c] sm:$0xf]
  %v73 = vld [vmem:[%s0 + $0x30] sm:$0xf]
  %v74 = vld [vmem:[%s0 + $0x34] sm:$0xf]
  %v75 = vld [vmem:[%s0 + $0x38] sm:$0xf]
  %v76 = vld [vmem:[%s0 + $0x3c] sm:$0xf]
  %s77 = sshra.s32 %s44, 3
  %s78 = sand.u32 %s44, 7
  %s79 = smul.addr %s77, 4
  %s80 = scalar_lea.vmem %s1, %s79
  %v81 = vld [vmem:[%s80] sm:$0xf]
  %v82 = vld [vmem:[%s80 + $0x4] sm:$0xf]
  %v83 = vld [vmem:[%s80 + $0x8] sm:$0xf]
  %v84 = vld [vmem:[%s80 + $0xc] sm:$0xf]
  %v85 = vld [vmem:[%s80 + $0x10] sm:$0xf]
  %v86 = vld [vmem:[%s80 + $0x14] sm:$0xf]
  %v87 = vld [vmem:[%s80 + $0x18] sm:$0xf]
  %v88 = vld [vmem:[%s80 + $0x1c] sm:$0xf]
  %v89 = vld [vmem:[%s80 + $0x20] sm:$0xf]
  %v90 = vld [vmem:[%s80 + $0x24] sm:$0xf]
  %v91 = vld [vmem:[%s80 + $0x28] sm:$0xf]
  %v92 = vld [vmem:[%s80 + $0x2c] sm:$0xf]
  %v93 = vld [vmem:[%s80 + $0x30] sm:$0xf]
  %v94 = vld [vmem:[%s80 + $0x34] sm:$0xf]
  %v95 = vld [vmem:[%s80 + $0x38] sm:$0xf]
  %v96 = vld [vmem:[%s80 + $0x3c] sm:$0xf]
  %v113 = vunpack.c.l.b16 %v61
  %v114 = vunpack.c.l.b16 %v62
  %v115 = vunpack.c.l.b16 %v63
  %v116 = vunpack.c.l.b16 %v64
  %v117 = vunpack.c.l.b16 %v65
  %v118 = vunpack.c.l.b16 %v66
  %v119 = vunpack.c.l.b16 %v67
  %v120 = vunpack.c.l.b16 %v68
  %v121 = vunpack.c.l.b16 %v69
  %v122 = vunpack.c.l.b16 %v70
  %v123 = vunpack.c.l.b16 %v71
  %v124 = vunpack.c.l.b16 %v72
  %v125 = vunpack.c.l.b16 %v73
  %v126 = vunpack.c.l.b16 %v74
  %v127 = vunpack.c.l.b16 %v75
  %v128 = vunpack.c.l.b16 %v76
  %v129 = vpack.c.b16 %v114, %v113
  %v130 = vpack.c.b16 %v116, %v115
  %v131 = vpack.c.b16 %v118, %v117
  %v132 = vpack.c.b16 %v120, %v119
  %v133 = vpack.c.b16 %v122, %v121
  %v134 = vpack.c.b16 %v124, %v123
  %v135 = vpack.c.b16 %v126, %v125
  %v136 = vpack.c.b16 %v128, %v127
  %v161 = vunpack.c.l.b16 %v81
  %v162 = vunpack.c.l.b16 %v82
  %v163 = vunpack.c.l.b16 %v83
  %v164 = vunpack.c.l.b16 %v84
  %v165 = vunpack.c.l.b16 %v85
  %v166 = vunpack.c.l.b16 %v86
  %v167 = vunpack.c.l.b16 %v87
  %v168 = vunpack.c.l.b16 %v88
  %v169 = vunpack.c.l.b16 %v89
  %v170 = vunpack.c.l.b16 %v90
  %v171 = vunpack.c.l.b16 %v91
  %v172 = vunpack.c.l.b16 %v92
  %v173 = vunpack.c.l.b16 %v93
  %v174 = vunpack.c.l.b16 %v94
  %v175 = vunpack.c.l.b16 %v95
  %v176 = vunpack.c.l.b16 %v96
  %v177 = vpack.c.b16 %v162, %v161
  %v178 = vpack.c.b16 %v164, %v163
  %v179 = vpack.c.b16 %v166, %v165
  %v180 = vpack.c.b16 %v168, %v167
  %v181 = vpack.c.b16 %v170, %v169
  %v182 = vpack.c.b16 %v172, %v171
  %v183 = vpack.c.b16 %v174, %v173
  %v184 = vpack.c.b16 %v176, %v175
  %193 = vmatprep.subr.bf16.mxu0 0
  %194 = vmatpush1.bf16.msra.mxu0 %v177
  %195 = vmatprep.subr.bf16.mxu0 0
  %196 = vmatpush1.bf16.msra.mxu0 %v178
  %197 = vmatprep.subr.bf16.mxu0 0
  %198 = vmatpush1.bf16.msra.mxu0 %v179
  %199 = vmatprep.subr.bf16.mxu0 0
  %200 = vmatpush1.bf16.msra.mxu0 %v180
  %201 = vmatprep.subr.bf16.mxu0 0
  %202 = vmatpush1.bf16.msra.mxu0 %v181
  %203 = vmatprep.subr.bf16.mxu0 0
  %204 = vmatpush1.bf16.msra.mxu0 %v182
  %205 = vmatprep.subr.bf16.mxu0 0
  %206 = vmatpush1.bf16.msra.mxu0 %v183
  %207 = vmatprep.subr.bf16.mxu0 0
  %208 = vmatpush1.bf16.msra.mxu0 %v184
  %209 = vmatprep.subr.bf16.mxu0 0
  %210 = vmatpush1.bf16.msra.mxu0 0
  %211 = vmatprep.subr.bf16.mxu0 0
  %212 = vmatpush1.bf16.msra.mxu0 0
  %213 = vmatprep.subr.bf16.mxu0 0
  %214 = vmatpush1.bf16.msra.mxu0 0
  %215 = vmatprep.subr.bf16.mxu0 0
  %216 = vmatpush1.bf16.msra.mxu0 0
  %217 = vmatprep.subr.bf16.mxu0 0
  %218 = vmatpush1.bf16.msra.mxu0 0
  %219 = vmatprep.subr.bf16.mxu0 0
  %220 = vmatpush1.bf16.msra.mxu0 0
  %221 = vmatprep.subr.bf16.mxu0 0
  %222 = vmatpush1.bf16.msra.mxu0 0
  %223 = vmatprep.subr.bf16.mxu0 0
  %224 = vmatpush1.bf16.msra.mxu0 0
  %225 = vmatprep.mubr.bf16.mxu0 0
  %226 = vmatmul.mubr.bf16.gmra.mrb[0].mxu0 %v129
  %v227 = vpop.f32.mrb[0].mxu0
  %v228 = vadd.f32 0.0, %v227
  %v229 = vpop.f32.mrb[0].mxu0
  %v230 = vpop.f32.mrb[0].mxu0
  %v231 = vadd.f32 0.0, %v230
  %v232 = vpop.f32.mrb[0].mxu0
  %233 = vmatprep.mubr.bf16.mxu0 0
  %234 = vmatmul.mubr.bf16.gmra.mrb[0].mxu0 %v130
  %v235 = vpop.f32.mrb[0].mxu0
  %v236 = vadd.f32 0.0, %v235
  %v237 = vpop.f32.mrb[0].mxu0
  %v238 = vpop.f32.mrb[0].mxu0
  %v239 = vadd.f32 0.0, %v238
  %v240 = vpop.f32.mrb[0].mxu0
  %241 = vmatprep.mubr.bf16.mxu0 0
  %242 = vmatmul.mubr.bf16.gmra.mrb[0].mxu0 %v131
  %v243 = vpop.f32.mrb[0].mxu0
  %v244 = vadd.f32 0.0, %v243
  %v245 = vpop.f32.mrb[0].mxu0
  %v246 = vpop.f32.mrb[0].mxu0
  %v247 = vadd.f32 0.0, %v246
  %v248 = vpop.f32.mrb[0].mxu0
  %249 = vmatprep.mubr.bf16.mxu0 0
  %250 = vmatmul.mubr.bf16.gmra.mrb[0].mxu0 %v132
  %v251 = vpop.f32.mrb[0].mxu0
  %v252 = vadd.f32 0.0, %v251
  %v253 = vpop.f32.mrb[0].mxu0
  %v254 = vpop.f32.mrb[0].mxu0
  %v255 = vadd.f32 0.0, %v254
  %v256 = vpop.f32.mrb[0].mxu0
  %257 = vmatprep.mubr.bf16.mxu0 0
  %258 = vmatmul.mubr.bf16.gmra.mrb[0].mxu0 %v133
  %v259 = vpop.f32.mrb[0].mxu0
  %v260 = vadd.f32 0.0, %v259
  %v261 = vpop.f32.mrb[0].mxu0
  %v262 = vpop.f32.mrb[0].mxu0
  %v263 = vadd.f32 0.0, %v262
  %v264 = vpop.f32.mrb[0].mxu0
  %265 = vmatprep.mubr.bf16.mxu0 0
  %266 = vmatmul.mubr.bf16.gmra.mrb[0].mxu0 %v134
  %v267 = vpop.f32.mrb[0].mxu0
  %v268 = vadd.f32 0.0, %v267
  %v269 = vpop.f32.mrb[0].mxu0
  %v270 = vpop.f32.mrb[0].mxu0
  %v271 = vadd.f32 0.0, %v270
  %v272 = vpop.f32.mrb[0].mxu0
  %273 = vmatprep.mubr.bf16.mxu0 0
  %274 = vmatmul.mubr.bf16.gmra.mrb[0].mxu0 %v135
  %v275 = vpop.f32.mrb[0].mxu0
  %v276 = vadd.f32 0.0, %v275
  %v277 = vpop.f32.mrb[0].mxu0
  %v278 = vpop.f32.mrb[0].mxu0
  %v279 = vadd.f32 0.0, %v278
  %v280 = vpop.f32.mrb[0].mxu0
  %281 = vmatprep.mubr.bf16.mxu0 0
  %282 = vmatmul.mubr.bf16.gmra.mrb[0].mxu0 %v136
  %v283 = vpop.f32.mrb[0].mxu0
  %v284 = vadd.f32 0.0, %v283
  %v285 = vpop.f32.mrb[0].mxu0
  %v286 = vpop.f32.mrb[0].mxu0
  %v287 = vadd.f32 0.0, %v286
  %v288 = vpop.f32.mrb[0].mxu0
  %289 = vdwg.mxu0
  %v290 = vadd.f32 %v45, %v228
  %v291 = vadd.f32 %v46, %v231
  %v292 = vadd.f32 %v47, %v236
  %v293 = vadd.f32 %v48, %v239
  %v294 = vadd.f32 %v49, %v244
  %v295 = vadd.f32 %v50, %v247
  %v296 = vadd.f32 %v51, %v252
  %v297 = vadd.f32 %v52, %v255
  %v298 = vadd.f32 %v53, %v260
  %v299 = vadd.f32 %v54, %v263
  %v300 = vadd.f32 %v55, %v268
  %v301 = vadd.f32 %v56, %v271
  %v302 = vadd.f32 %v57, %v276
  %v303 = vadd.f32 %v58, %v279
  %v304 = vadd.f32 %v59, %v284
  %v305 = vadd.f32 %v60, %v287
  %306 = vst [vmem:[#allocation2] sm:$0xff] %v290
  %307 = vst [vmem:[#allocation2 + $0x8] sm:$0xff] %v291
  %308 = vst [vmem:[#allocation2 + $0x10] sm:$0xff] %v292
  %309 = vst [vmem:[#allocation2 + $0x18] sm:$0xff] %v293
  %310 = vst [vmem:[#allocation2 + $0x20] sm:$0xff] %v294
  %311 = vst [vmem:[#allocation2 + $0x28] sm:$0xff] %v295
  %312 = vst [vmem:[#allocation2 + $0x30] sm:$0xff] %v296
  %313 = vst [vmem:[#allocation2 + $0x38] sm:$0xff] %v297
  %314 = vst [vmem:[#allocation2 + $0x40] sm:$0xff] %v298
  %315 = vst [vmem:[#allocation2 + $0x48] sm:$0xff] %v299
  %316 = vst [vmem:[#allocation2 + $0x50] sm:$0xff] %v300
  %317 = vst [vmem:[#allocation2 + $0x58] sm:$0xff] %v301
  %318 = vst [vmem:[#allocation2 + $0x60] sm:$0xff] %v302
  %319 = vst [vmem:[#allocation2 + $0x68] sm:$0xff] %v303
  %320 = vst [vmem:[#allocation2 + $0x70] sm:$0xff] %v304
  %321 = vst [vmem:[#allocation2 + $0x78] sm:$0xff] %v305
  // Predicated region
  $region30: #{graphsage_forward.3} parent=0 // pred_check
    %p322 = pneg %p24
  $region31: #{graphsage_forward.3} parent=0 // pred_check_branch
    %324 = sbr.rel (%p322) target = $region33
  $region32: #{graphsage_forward.3} parent=0 // pred_region
    %s325 = smul.u32 0, 128
    %s326 = sshra.s32 %s325, 3
    %s327 = sand.u32 %s325, 7
    %s328 = smul.addr %s326, 4
    %s329 = scalar_lea.vmem %s1, %s328
    %v330 = vld [vmem:[%s329] sm:$0xf]
    %v331 = vld [vmem:[%s329 + $0x4] sm:$0xf]
    %v332 = vld [vmem:[%s329 + $0x8] sm:$0xf]
    %v333 = vld [vmem:[%s329 + $0xc] sm:$0xf]
    %v334 = vld [vmem:[%s329 + $0x10] sm:$0xf]
    %v335 = vld [vmem:[%s329 + $0x14] sm:$0xf]
    %v336 = vld [vmem:[%s329 + $0x18] sm:$0xf]
    %v337 = vld [vmem:[%s329 + $0x1c] sm:$0xf]
    %v338 = vld [vmem:[%s329 + $0x20] sm:$0xf]
    %v339 = vld [vmem:[%s329 + $0x24] sm:$0xf]
    %v340 = vld [vmem:[%s329 + $0x28] sm:$0xf]
    %v341 = vld [vmem:[%s329 + $0x2c] sm:$0xf]
    %v342 = vld [vmem:[%s329 + $0x30] sm:$0xf]
    %v343 = vld [vmem:[%s329 + $0x34] sm:$0xf]
    %v344 = vld [vmem:[%s329 + $0x38] sm:$0xf]
    %v345 = vld [vmem:[%s329 + $0x3c] sm:$0xf]
    %v346 = vunpack.c.l.bf16 %v330
    %v347 = vunpack.c.l.bf16 %v331
    %v348 = vunpack.c.l.bf16 %v332
    %v349 = vunpack.c.l.bf16 %v333
    %v350 = vunpack.c.l.bf16 %v334
    %v351 = vunpack.c.l.bf16 %v335
    %v352 = vunpack.c.l.bf16 %v336
    %v353 = vunpack.c.l.bf16 %v337
    %v354 = vunpack.c.l.bf16 %v338
    %v355 = vunpack.c.l.bf16 %v339
    %v356 = vunpack.c.l.bf16 %v340
    %v357 = vunpack.c.l.bf16 %v341
    %v358 = vunpack.c.l.bf16 %v342
    %v359 = vunpack.c.l.bf16 %v343
    %v360 = vunpack.c.l.bf16 %v344
    %v361 = vunpack.c.l.bf16 %v345
    %s362 = scalar_lea.vmem %s2, %s325
    %v363 = vld [vmem:[%s362] sm:$0xff]
    %v364 = vld [vmem:[%s362 + $0x8] sm:$0xff]
    %v365 = vld [vmem:[%s362 + $0x10] sm:$0xff]
    %v366 = vld [vmem:[%s362 + $0x18] sm:$0xff]
    %v367 = vld [vmem:[%s362 + $0x20] sm:$0xff]
    %v368 = vld [vmem:[%s362 + $0x28] sm:$0xff]
    %v369 = vld [vmem:[%s362 + $0x30] sm:$0xff]
    %v370 = vld [vmem:[%s362 + $0x38] sm:$0xff]
    %v371 = vld [vmem:[%s362 + $0x40] sm:$0xff]
    %v372 = vld [vmem:[%s362 + $0x48] sm:$0xff]
    %v373 = vld [vmem:[%s362 + $0x50] sm:$0xff]
    %v374 = vld [vmem:[%s362 + $0x58] sm:$0xff]
    %v375 = vld [vmem:[%s362 + $0x60] sm:$0xff]
    %v376 = vld [vmem:[%s362 + $0x68] sm:$0xff]
    %v377 = vld [vmem:[%s362 + $0x70] sm:$0xff]
    %v378 = vld [vmem:[%s362 + $0x78] sm:$0xff]
    %v379 = vld [vmem:[#allocation2] sm:$0xff]
    %v380 = vld [vmem:[#allocation2 + $0x8] sm:$0xff]
    %v381 = vld [vmem:[#allocation2 + $0x10] sm:$0xff]
    %v382 = vld [vmem:[#allocation2 + $0x18] sm:$0xff]
    %v383 = vld [vmem:[#allocation2 + $0x20] sm:$0xff]
    %v384 = vld [vmem:[#allocation2 + $0x28] sm:$0xff]
    %v385 = vld [vmem:[#allocation2 + $0x30] sm:$0xff]
    %v386 = vld [vmem:[#allocation2 + $0x38] sm:$0xff]
    %v387 = vld [vmem:[#allocation2 + $0x40] sm:$0xff]
    %v388 = vld [vmem:[#allocation2 + $0x48] sm:$0xff]
    %v389 = vld [vmem:[#allocation2 + $0x50] sm:$0xff]
    %v390 = vld [vmem:[#allocation2 + $0x58] sm:$0xff]
    %v391 = vld [vmem:[#allocation2 + $0x60] sm:$0xff]
    %v392 = vld [vmem:[#allocation2 + $0x68] sm:$0xff]
    %v393 = vld [vmem:[#allocation2 + $0x70] sm:$0xff]
    %v394 = vld [vmem:[#allocation2 + $0x78] sm:$0xff]
    %396 = vset.pattern.permute.xlu0 0
    %397 = vperm.xlu0 %396, %v363
    %v398 = vpop.permute.xlu0 %397
    %401 = vset.pattern.permute.xlu0 0
    %402 = vperm.xlu0 %401, %v364
    %v403 = vpop.permute.xlu0 %402
    %406 = vset.pattern.permute.xlu0 0
    %407 = vperm.xlu0 %406, %v365
    %v408 = vpop.permute.xlu0 %407
    %411 = vset.pattern.permute.xlu0 0
    %412 = vperm.xlu0 %411, %v366
    %v413 = vpop.permute.xlu0 %412
    %416 = vset.pattern.permute.xlu0 0
    %417 = vperm.xlu0 %416, %v367
    %v418 = vpop.permute.xlu0 %417
    %421 = vset.pattern.permute.xlu0 0
    %422 = vperm.xlu0 %421, %v368
    %v423 = vpop.permute.xlu0 %422
    %426 = vset.pattern.permute.xlu0 0
    %427 = vperm.xlu0 %426, %v369
    %v428 = vpop.permute.xlu0 %427
    %431 = vset.pattern.permute.xlu0 0
    %432 = vperm.xlu0 %431, %v370
    %v433 = vpop.permute.xlu0 %432
    %436 = vset.pattern.permute.xlu0 0
    %437 = vperm.xlu0 %436, %v371
    %v438 = vpop.permute.xlu0 %437
    %441 = vset.pattern.permute.xlu0 0
    %442 = vperm.xlu0 %441, %v372
    %v443 = vpop.permute.xlu0 %442
    %446 = vset.pattern.permute.xlu0 0
    %447 = vperm.xlu0 %446, %v373
    %v448 = vpop.permute.xlu0 %447
    %451 = vset.pattern.permute.xlu0 0
    %452 = vperm.xlu0 %451, %v374
    %v453 = vpop.permute.xlu0 %452
    %456 = vset.pattern.permute.xlu0 0
    %457 = vperm.xlu0 %456, %v375
    %v458 = vpop.permute.xlu0 %457
    %461 = vset.pattern.permute.xlu0 0
    %462 = vperm.xlu0 %461, %v376
    %v463 = vpop.permute.xlu0 %462
    %466 = vset.pattern.permute.xlu0 0
    %467 = vperm.xlu0 %466, %v377
    %v468 = vpop.permute.xlu0 %467
    %471 = vset.pattern.permute.xlu0 0
    %472 = vperm.xlu0 %471, %v378
    %v473 = vpop.permute.xlu0 %472
    %v475 = vmul.f32 %v379, %v398
    %v476 = vmul.f32 %v380, %v403
    %v477 = vmul.f32 %v381, %v408
    %v478 = vmul.f32 %v382, %v413
    %v479 = vmul.f32 %v383, %v418
    %v480 = vmul.f32 %v384, %v423
    %v481 = vmul.f32 %v385, %v428
    %v482 = vmul.f32 %v386, %v433
    %v483 = vmul.f32 %v387, %v438
    %v484 = vmul.f32 %v388, %v443
    %v485 = vmul.f32 %v389, %v448
    %v486 = vmul.f32 %v390, %v453
    %v487 = vmul.f32 %v391, %v458
    %v488 = vmul.f32 %v392, %v463
    %v489 = vmul.f32 %v393, %v468
    %v490 = vmul.f32 %v394, %v473
    %v491 = vld [vmem:[%s3] sm:$0xff]
    %v492 = vld [vmem:[%s3 + $0x8] sm:$0xff]
    %v493 = vld [vmem:[%s3 + $0x10] sm:$0xff]
    %v494 = vld [vmem:[%s3 + $0x18] sm:$0xff]
    %v495 = vld [vmem:[%s3 + $0x20] sm:$0xff]
    %v496 = vld [vmem:[%s3 + $0x28] sm:$0xff]
    %v497 = vld [vmem:[%s3 + $0x30] sm:$0xff]
    %v498 = vld [vmem:[%s3 + $0x38] sm:$0xff]
    %v499 = vld [vmem:[%s3 + $0x40] sm:$0xff]
    %v500 = vld [vmem:[%s3 + $0x48] sm:$0xff]
    %v501 = vld [vmem:[%s3 + $0x50] sm:$0xff]
    %v502 = vld [vmem:[%s3 + $0x58] sm:$0xff]
    %v503 = vld [vmem:[%s3 + $0x60] sm:$0xff]
    %v504 = vld [vmem:[%s3 + $0x68] sm:$0xff]
    %v505 = vld [vmem:[%s3 + $0x70] sm:$0xff]
    %v506 = vld [vmem:[%s3 + $0x78] sm:$0xff]
    %v507 = vld [vmem:[%s4] sm:$0xff]
    %v508 = vld [vmem:[%s4 + $0x8] sm:$0xff]
    %v509 = vld [vmem:[%s4 + $0x10] sm:$0xff]
    %v510 = vld [vmem:[%s4 + $0x18] sm:$0xff]
    %v511 = vld [vmem:[%s4 + $0x20] sm:$0xff]
    %v512 = vld [vmem:[%s4 + $0x28] sm:$0xff]
    %v513 = vld [vmem:[%s4 + $0x30] sm:$0xff]
    %v514 = vld [vmem:[%s4 + $0x38] sm:$0xff]
    %v515 = vld [vmem:[%s4 + $0x40] sm:$0xff]
    %v516 = vld [vmem:[%s4 + $0x48] sm:$0xff]
    %v517 = vld [vmem:[%s4 + $0x50] sm:$0xff]
    %v518 = vld [vmem:[%s4 + $0x58] sm:$0xff]
    %v519 = vld [vmem:[%s4 + $0x60] sm:$0xff]
    %v520 = vld [vmem:[%s4 + $0x68] sm:$0xff]
    %v521 = vld [vmem:[%s4 + $0x70] sm:$0xff]
    %v522 = vld [vmem:[%s4 + $0x78] sm:$0xff]
    %523 = vmatprep.subr.mxu0 0.0
    %524 = vmatpush1.msra.mxu0 %v507
    %525 = vmatprep.subr.mxu0 0.0
    %526 = vmatpush1.msra.mxu0 %v508
    %527 = vmatprep.subr.mxu0 0.0
    %528 = vmatpush1.msra.mxu0 %v509
    %529 = vmatprep.subr.mxu0 0.0
    %530 = vmatpush1.msra.mxu0 %v510
    %531 = vmatprep.subr.mxu0 0.0
    %532 = vmatpush1.msra.mxu0 %v511
    %533 = vmatprep.subr.mxu0 0.0
    %534 = vmatpush1.msra.mxu0 %v512
    %535 = vmatprep.subr.mxu0 0.0
    %536 = vmatpush1.msra.mxu0 %v513
    %537 = vmatprep.subr.mxu0 0.0
    %538 = vmatpush1.msra.mxu0 %v514
    %539 = vmatprep.subr.mxu0 0.0
    %540 = vmatpush1.msra.mxu0 %v515
    %541 = vmatprep.subr.mxu0 0.0
    %542 = vmatpush1.msra.mxu0 %v516
    %543 = vmatprep.subr.mxu0 0.0
    %544 = vmatpush1.msra.mxu0 %v517
    %545 = vmatprep.subr.mxu0 0.0
    %546 = vmatpush1.msra.mxu0 %v518
    %547 = vmatprep.subr.mxu0 0.0
    %548 = vmatpush1.msra.mxu0 %v519
    %549 = vmatprep.subr.mxu0 0.0
    %550 = vmatpush1.msra.mxu0 %v520
    %551 = vmatprep.subr.mxu0 0.0
    %552 = vmatpush1.msra.mxu0 %v521
    %553 = vmatprep.subr.mxu0 0.0
    %554 = vmatpush1.msra.mxu0 %v522
    %555 = vmatprep.subr.mxu0 0.0
    %556 = vmatpush1.msra.mxu0 0.0
    %557 = vmatprep.subr.mxu0 0.0
    %558 = vmatpush1.msra.mxu0 0.0
    %559 = vmatprep.subr.mxu0 0.0
    %560 = vmatpush1.msra.mxu0 0.0
    %561 = vmatprep.subr.mxu0 0.0
    %562 = vmatpush1.msra.mxu0 0.0
    %563 = vmatprep.subr.mxu0 0.0
    %564 = vmatpush1.msra.mxu0 0.0
    %565 = vmatprep.subr.mxu0 0.0
    %566 = vmatpush1.msra.mxu0 0.0
    %567 = vmatprep.subr.mxu0 0.0
    %568 = vmatpush1.msra.mxu0 0.0
    %569 = vmatprep.subr.mxu0 0.0
    %570 = vmatpush1.msra.mxu0 0.0
    %571 = vmatprep.subr.mxu0 0.0
    %572 = vmatpush1.msra.mxu0 0.0
    %573 = vmatprep.subr.mxu0 0.0
    %574 = vmatpush1.msra.mxu0 0.0
    %575 = vmatprep.subr.mxu0 0.0
    %576 = vmatpush1.msra.mxu0 0.0
    %577 = vmatprep.subr.mxu0 0.0
    %578 = vmatpush1.msra.mxu0 0.0
    %579 = vmatprep.subr.mxu0 0.0
    %580 = vmatpush1.msra.mxu0 0.0
    %581 = vmatprep.subr.mxu0 0.0
    %582 = vmatpush1.msra.mxu0 0.0
    %583 = vmatprep.subr.mxu0 0.0
    %584 = vmatpush1.msra.mxu0 0.0
    %585 = vmatprep.subr.mxu0 0.0
    %586 = vmatpush1.msra.mxu0 0.0
    %587 = vmatprep.mubr.f32.mxu0 0.0
    %588 = vmatmul.mubr.f32.gmra.mrb[0].mxu0 %v346
    %v589 = vpop.f32.mrb[0].mxu0
    %v590 = vadd.f32 0.0, %v589
    %v591 = vpop.f32.mrb[0].mxu0
    %592 = vmatprep.mubr.f32.mxu0 0.0
    %593 = vmatmul.mubr.f32.gmra.mrb[0].mxu0 %v347
    %v594 = vpop.f32.mrb[0].mxu0
    %v595 = vadd.f32 0.0, %v594
    %v596 = vpop.f32.mrb[0].mxu0
    %597 = vmatprep.mubr.f32.mxu0 0.0
    %598 = vmatmul.mubr.f32.gmra.mrb[0].mxu0 %v348
    %v599 = vpop.f32.mrb[0].mxu0
    %v600 = vadd.f32 0.0, %v599
    %v601 = vpop.f32.mrb[0].mxu0
    %602 = vmatprep.mubr.f32.mxu0 0.0
    %603 = vmatmul.mubr.f32.gmra.mrb[0].mxu0 %v349
    %v604 = vpop.f32.mrb[0].mxu0
    %v605 = vadd.f32 0.0, %v604
    %v606 = vpop.f32.mrb[0].mxu0
    %607 = vmatprep.mubr.f32.mxu0 0.0
    %608 = vmatmul.mubr.f32.gmra.mrb[0].mxu0 %v350
    %v609 = vpop.f32.mrb[0].mxu0
    %v610 = vadd.f32 0.0, %v609
    %v611 = vpop.f32.mrb[0].mxu0
    %612 = vmatprep.mubr.f32.mxu0 0.0
    %613 = vmatmul.mubr.f32.gmra.mrb[0].mxu0 %v351
    %v614 = vpop.f32.mrb[0].mxu0
    %v615 = vadd.f32 0.0, %v614
    %v616 = vpop.f32.mrb[0].mxu0
    %617 = vmatprep.mubr.f32.mxu0 0.0
    %618 = vmatmul.mubr.f32.gmra.mrb[0].mxu0 %v352
    %v619 = vpop.f32.mrb[0].mxu0
    %v620 = vadd.f32 0.0, %v619
    %v621 = vpop.f32.mrb[0].mxu0
    %622 = vmatprep.mubr.f32.mxu0 0.0
    %623 = vmatmul.mubr.f32.gmra.mrb[0].mxu0 %v353
    %v624 = vpop.f32.mrb[0].mxu0
    %v625 = vadd.f32 0.0, %v624
    %v626 = vpop.f32.mrb[0].mxu0
    %627 = vmatprep.mubr.f32.mxu0 0.0
    %628 = vmatmul.mubr.f32.gmra.mrb[0].mxu0 %v354
    %v629 = vpop.f32.mrb[0].mxu0
    %v630 = vadd.f32 0.0, %v629
    %v631 = vpop.f32.mrb[0].mxu0
    %632 = vmatprep.mubr.f32.mxu0 0.0
    %633 = vmatmul.mubr.f32.gmra.mrb[0].mxu0 %v355
    %v634 = vpop.f32.mrb[0].mxu0
    %v635 = vadd.f32 0.0, %v634
    %v636 = vpop.f32.mrb[0].mxu0
    %637 = vmatprep.mubr.f32.mxu0 0.0
    %638 = vmatmul.mubr.f32.gmra.mrb[0].mxu0 %v356
    %v639 = vpop.f32.mrb[0].mxu0
    %v640 = vadd.f32 0.0, %v639
    %v641 = vpop.f32.mrb[0].mxu0
    %642 = vmatprep.mubr.f32.mxu0 0.0
    %643 = vmatmul.mubr.f32.gmra.mrb[0].mxu0 %v357
    %v644 = vpop.f32.mrb[0].mxu0
    %v645 = vadd.f32 0.0, %v644
    %v646 = vpop.f32.mrb[0].mxu0
    %647 = vmatprep.mubr.f32.mxu0 0.0
    %648 = vmatmul.mubr.f32.gmra.mrb[0].mxu0 %v358
    %v649 = vpop.f32.mrb[0].mxu0
    %v650 = vadd.f32 0.0, %v649
    %v651 = vpop.f32.mrb[0].mxu0
    %652 = vmatprep.mubr.f32.mxu0 0.0
    %653 = vmatmul.mubr.f32.gmra.mrb[0].mxu0 %v359
    %v654 = vpop.f32.mrb[0].mxu0
    %v655 = vadd.f32 0.0, %v654
    %v656 = vpop.f32.mrb[0].mxu0
    %657 = vmatprep.mubr.f32.mxu0 0.0
    %658 = vmatmul.mubr.f32.gmra.mrb[0].mxu0 %v360
    %v659 = vpop.f32.mrb[0].mxu0
    %v660 = vadd.f32 0.0, %v659
    %v661 = vpop.f32.mrb[0].mxu0
    %662 = vmatprep.mubr.f32.mxu0 0.0
    %663 = vmatmul.mubr.f32.gmra.mrb[0].mxu0 %v361
    %v664 = vpop.f32.mrb[0].mxu0
    %v665 = vadd.f32 0.0, %v664
    %v666 = vpop.f32.mrb[0].mxu0
    %667 = vdwg.mxu0
    %668 = vmatprep.subr.mxu0 0.0
    %669 = vmatpush1.msra.mxu0 %v491
    %670 = vmatprep.subr.mxu0 0.0
    %671 = vmatpush1.msra.mxu0 %v492
    %672 = vmatprep.subr.mxu0 0.0
    %673 = vmatpush1.msra.mxu0 %v493
    %674 = vmatprep.subr.mxu0 0.0
    %675 = vmatpush1.msra.mxu0 %v494
    %676 = vmatprep.subr.mxu0 0.0
    %677 = vmatpush1.msra.mxu0 %v495
    %678 = vmatprep.subr.mxu0 0.0
    %679 = vmatpush1.msra.mxu0 %v496
    %680 = vmatprep.subr.mxu0 0.0
    %681 = vmatpush1.msra.mxu0 %v497
    %682 = vmatprep.subr.mxu0 0.0
    %683 = vmatpush1.msra.mxu0 %v498
    %684 = vmatprep.subr.mxu0 0.0
    %685 = vmatpush1.msra.mxu0 %v499
    %686 = vmatprep.subr.mxu0 0.0
    %687 = vmatpush1.msra.mxu0 %v500
    %688 = vmatprep.subr.mxu0 0.0
    %689 = vmatpush1.msra.mxu0 %v501
    %690 = vmatprep.subr.mxu0 0.0
    %691 = vmatpush1.msra.mxu0 %v502
    %692 = vmatprep.subr.mxu0 0.0
    %693 = vmatpush1.msra.mxu0 %v503
    %694 = vmatprep.subr.mxu0 0.0
    %695 = vmatpush1.msra.mxu0 %v504
    %696 = vmatprep.subr.mxu0 0.0
    %697 = vmatpush1.msra.mxu0 %v505
    %698 = vmatprep.subr.mxu0 0.0
    %699 = vmatpush1.msra.mxu0 %v506
    %700 = vmatprep.subr.mxu0 0.0
    %701 = vmatpush1.msra.mxu0 0.0
    %702 = vmatprep.subr.mxu0 0.0
    %703 = vmatpush1.msra.mxu0 0.0
    %704 = vmatprep.subr.mxu0 0.0
    %705 = vmatpush1.msra.mxu0 0.0
    %706 = vmatprep.subr.mxu0 0.0
    %707 = vmatpush1.msra.mxu0 0.0
    %708 = vmatprep.subr.mxu0 0.0
    %709 = vmatpush1.msra.mxu0 0.0
    %710 = vmatprep.subr.mxu0 0.0
    %711 = vmatpush1.msra.mxu0 0.0
    %712 = vmatprep.subr.mxu0 0.0
    %713 = vmatpush1.msra.mxu0 0.0
    %714 = vmatprep.subr.mxu0 0.0
    %715 = vmatpush1.msra.mxu0 0.0
    %716 = vmatprep.subr.mxu0 0.0
    %717 = vmatpush1.msra.mxu0 0.0
    %718 = vmatprep.subr.mxu0 0.0
    %719 = vmatpush1.msra.mxu0 0.0
    %720 = vmatprep.subr.mxu0 0.0
    %721 = vmatpush1.msra.mxu0 0.0
    %722 = vmatprep.subr.mxu0 0.0
    %723 = vmatpush1.msra.mxu0 0.0
    %724 = vmatprep.subr.mxu0 0.0
    %725 = vmatpush1.msra.mxu0 0.0
    %726 = vmatprep.subr.mxu0 0.0
    %727 = vmatpush1.msra.mxu0 0.0
    %728 = vmatprep.subr.mxu0 0.0
    %729 = vmatpush1.msra.mxu0 0.0
    %730 = vmatprep.subr.mxu0 0.0
    %731 = vmatpush1.msra.mxu0 0.0
    %732 = vmatprep.mubr.f32.mxu0 0.0
    %733 = vmatmul.mubr.f32.gmra.mrb[0].mxu0 %v475
    %v734 = vpop.f32.mrb[0].mxu0
    %v735 = vadd.f32 %v590, %v734
    %v736 = vpop.f32.mrb[0].mxu0
    %737 = vmatprep.mubr.f32.mxu0 0.0
    %738 = vmatmul.mubr.f32.gmra.mrb[0].mxu0 %v476
    %v739 = vpop.f32.mrb[0].mxu0
    %v740 = vadd.f32 %v595, %v739
    %v741 = vpop.f32.mrb[0].mxu0
    %742 = vmatprep.mubr.f32.mxu0 0.0
    %743 = vmatmul.mubr.f32.gmra.mrb[0].mxu0 %v477
    %v744 = vpop.f32.mrb[0].mxu0
    %v745 = vadd.f32 %v600, %v744
    %v746 = vpop.f32.mrb[0].mxu0
    %747 = vmatprep.mubr.f32.mxu0 0.0
    %748 = vmatmul.mubr.f32.gmra.mrb[0].mxu0 %v478
    %v749 = vpop.f32.mrb[0].mxu0
    %v750 = vadd.f32 %v605, %v749
    %v751 = vpop.f32.mrb[0].mxu0
    %752 = vmatprep.mubr.f32.mxu0 0.0
    %753 = vmatmul.mubr.f32.gmra.mrb[0].mxu0 %v479
    %v754 = vpop.f32.mrb[0].mxu0
    %v755 = vadd.f32 %v610, %v754
    %v756 = vpop.f32.mrb[0].mxu0
    %757 = vmatprep.mubr.f32.mxu0 0.0
    %758 = vmatmul.mubr.f32.gmra.mrb[0].mxu0 %v480
    %v759 = vpop.f32.mrb[0].mxu0
    %v760 = vadd.f32 %v615, %v759
    %v761 = vpop.f32.mrb[0].mxu0
    %762 = vmatprep.mubr.f32.mxu0 0.0
    %763 = vmatmul.mubr.f32.gmra.mrb[0].mxu0 %v481
    %v764 = vpop.f32.mrb[0].mxu0
    %v765 = vadd.f32 %v620, %v764
    %v766 = vpop.f32.mrb[0].mxu0
    %767 = vmatprep.mubr.f32.mxu0 0.0
    %768 = vmatmul.mubr.f32.gmra.mrb[0].mxu0 %v482
    %v769 = vpop.f32.mrb[0].mxu0
    %v770 = vadd.f32 %v625, %v769
    %v771 = vpop.f32.mrb[0].mxu0
    %772 = vmatprep.mubr.f32.mxu0 0.0
    %773 = vmatmul.mubr.f32.gmra.mrb[0].mxu0 %v483
    %v774 = vpop.f32.mrb[0].mxu0
    %v775 = vadd.f32 %v630, %v774
    %v776 = vpop.f32.mrb[0].mxu0
    %777 = vmatprep.mubr.f32.mxu0 0.0
    %778 = vmatmul.mubr.f32.gmra.mrb[0].mxu0 %v484
    %v779 = vpop.f32.mrb[0].mxu0
    %v780 = vadd.f32 %v635, %v779
    %v781 = vpop.f32.mrb[0].mxu0
    %782 = vmatprep.mubr.f32.mxu0 0.0
    %783 = vmatmul.mubr.f32.gmra.mrb[0].mxu0 %v485
    %v784 = vpop.f32.mrb[0].mxu0
    %v785 = vadd.f32 %v640, %v784
    %v786 = vpop.f32.mrb[0].mxu0
    %787 = vmatprep.mubr.f32.mxu0 0.0
    %788 = vmatmul.mubr.f32.gmra.mrb[0].mxu0 %v486
    %v789 = vpop.f32.mrb[0].mxu0
    %v790 = vadd.f32 %v645, %v789
    %v791 = vpop.f32.mrb[0].mxu0
    %792 = vmatprep.mubr.f32.mxu0 0.0
    %793 = vmatmul.mubr.f32.gmra.mrb[0].mxu0 %v487
    %v794 = vpop.f32.mrb[0].mxu0
    %v795 = vadd.f32 %v650, %v794
    %v796 = vpop.f32.mrb[0].mxu0
    %797 = vmatprep.mubr.f32.mxu0 0.0
    %798 = vmatmul.mubr.f32.gmra.mrb[0].mxu0 %v488
    %v799 = vpop.f32.mrb[0].mxu0
    %v800 = vadd.f32 %v655, %v799
    %v801 = vpop.f32.mrb[0].mxu0
    %802 = vmatprep.mubr.f32.mxu0 0.0
    %803 = vmatmul.mubr.f32.gmra.mrb[0].mxu0 %v489
    %v804 = vpop.f32.mrb[0].mxu0
    %v805 = vadd.f32 %v660, %v804
    %v806 = vpop.f32.mrb[0].mxu0
    %807 = vmatprep.mubr.f32.mxu0 0.0
    %808 = vmatmul.mubr.f32.gmra.mrb[0].mxu0 %v490
    %v809 = vpop.f32.mrb[0].mxu0
    %v810 = vadd.f32 %v665, %v809
    %v811 = vpop.f32.mrb[0].mxu0
    %812 = vdwg.mxu0
    %v813 = vld [vmem:[%s5] sm:$0x1]
    %v815 = vlaneseq
    %v816 = vshrl.u32 %v815, 7
    %v817 = vsub.s32 0, %v816
    %v818 = vrot.slane %v813, %v817
    %v820 = vadd.f32 %v735, %v818
    %v821 = vadd.f32 %v740, %v818
    %v822 = vadd.f32 %v745, %v818
    %v823 = vadd.f32 %v750, %v818
    %v824 = vadd.f32 %v755, %v818
    %v825 = vadd.f32 %v760, %v818
    %v826 = vadd.f32 %v765, %v818
    %v827 = vadd.f32 %v770, %v818
    %v828 = vadd.f32 %v775, %v818
    %v829 = vadd.f32 %v780, %v818
    %v830 = vadd.f32 %v785, %v818
    %v831 = vadd.f32 %v790, %v818
    %v832 = vadd.f32 %v795, %v818
    %v833 = vadd.f32 %v800, %v818
    %v834 = vadd.f32 %v805, %v818
    %v835 = vadd.f32 %v810, %v818
    %v836 = vmax.f32 %v820, 0.0
    %v837 = vmax.f32 %v821, 0.0
    %v838 = vmax.f32 %v822, 0.0
    %v839 = vmax.f32 %v823, 0.0
    %v840 = vmax.f32 %v824, 0.0
    %v841 = vmax.f32 %v825, 0.0
    %v842 = vmax.f32 %v826, 0.0
    %v843 = vmax.f32 %v827, 0.0
    %v844 = vmax.f32 %v828, 0.0
    %v845 = vmax.f32 %v829, 0.0
    %v846 = vmax.f32 %v830, 0.0
    %v847 = vmax.f32 %v831, 0.0
    %v848 = vmax.f32 %v832, 0.0
    %v849 = vmax.f32 %v833, 0.0
    %v850 = vmax.f32 %v834, 0.0
    %v851 = vmax.f32 %v835, 0.0
    %v852 = vpack.c.bf16 %v837, %v836
    %v853 = vpack.c.bf16 %v839, %v838
    %v854 = vpack.c.bf16 %v841, %v840
    %v855 = vpack.c.bf16 %v843, %v842
    %v856 = vpack.c.bf16 %v845, %v844
    %v857 = vpack.c.bf16 %v847, %v846
    %v858 = vpack.c.bf16 %v849, %v848
    %v859 = vpack.c.bf16 %v851, %v850
    %v868 = vunpack.c.l.b16 %v852
    %v869 = vunpack.c.h.b16 %v852
    %v870 = vunpack.c.l.b16 %v853
    %v871 = vunpack.c.h.b16 %v853
    %v872 = vunpack.c.l.b16 %v854
    %v873 = vunpack.c.h.b16 %v854
    %v874 = vunpack.c.l.b16 %v855
    %v875 = vunpack.c.h.b16 %v855
    %v876 = vunpack.c.l.b16 %v856
    %v877 = vunpack.c.h.b16 %v856
    %v878 = vunpack.c.l.b16 %v857
    %v879 = vunpack.c.h.b16 %v857
    %v880 = vunpack.c.l.b16 %v858
    %v881 = vunpack.c.h.b16 %v858
    %v882 = vunpack.c.l.b16 %v859
    %v883 = vunpack.c.h.b16 %v859
    %v884 = vpack.c.b16 %v868, %v868
    %v885 = vpack.c.b16 %v869, %v869
    %v886 = vpack.c.b16 %v870, %v870
    %v887 = vpack.c.b16 %v871, %v871
    %v888 = vpack.c.b16 %v872, %v872
    %v889 = vpack.c.b16 %v873, %v873
    %v890 = vpack.c.b16 %v874, %v874
    %v891 = vpack.c.b16 %v875, %v875
    %v892 = vpack.c.b16 %v876, %v876
    %v893 = vpack.c.b16 %v877, %v877
    %v894 = vpack.c.b16 %v878, %v878
    %v895 = vpack.c.b16 %v879, %v879
    %v896 = vpack.c.b16 %v880, %v880
    %v897 = vpack.c.b16 %v881, %v881
    %v898 = vpack.c.b16 %v882, %v882
    %v899 = vpack.c.b16 %v883, %v883
    %916 = vst [vmem:[%s6] sm:$0xf] %v884
    %917 = vst [vmem:[%s6 + $0x4] sm:$0xf] %v885
    %918 = vst [vmem:[%s6 + $0x8] sm:$0xf] %v886
    %919 = vst [vmem:[%s6 + $0xc] sm:$0xf] %v887
    %920 = vst [vmem:[%s6 + $0x10] sm:$0xf] %v888
    %921 = vst [vmem:[%s6 + $0x14] sm:$0xf] %v889
    %922 = vst [vmem:[%s6 + $0x18] sm:$0xf] %v890
    %923 = vst [vmem:[%s6 + $0x1c] sm:$0xf] %v891
    %924 = vst [vmem:[%s6 + $0x20] sm:$0xf] %v892
    %925 = vst [vmem:[%s6 + $0x24] sm:$0xf] %v893
    %926 = vst [vmem:[%s6 + $0x28] sm:$0xf] %v894
    %927 = vst [vmem:[%s6 + $0x2c] sm:$0xf] %v895
    %928 = vst [vmem:[%s6 + $0x30] sm:$0xf] %v896
    %929 = vst [vmem:[%s6 + $0x34] sm:$0xf] %v897
    %930 = vst [vmem:[%s6 + $0x38] sm:$0xf] %v898
    %931 = vst [vmem:[%s6 + $0x3c] sm:$0xf] %v899
  $region33: #{graphsage_forward.3} parent=0 // pred_fallthru
    _
  // Predicated region
  $region34: #{graphsage_forward.3} parent=0 // pred_check
    _
  $region35: #{graphsage_forward.3} parent=0 // pred_check_branch
    %933 = sbr.rel (0) target = $region37
  $region36: #{graphsage_forward.3} parent=0 // pred_region
    _
  $region37: #{graphsage_forward.3} parent=0 // pred_fallthru
    _
  // Predicated region
  $region38: #{graphsage_forward.3} parent=0 // pred_check
    _
  $region39: #{graphsage_forward.3} parent=0 // pred_check_branch
    %935 = sbr.rel (0) target = $region41
  $region40: #{graphsage_forward.3} parent=0 // pred_region
    _
  $region41: #{graphsage_forward.3} parent=0 // pred_fallthru
    _

</llo_original>
